<compile_context>
chip_gen: v7x
topology: tpu7x:2x2x1
jax: 0.10.0
libtpu: 0.0.40
codegen_flags: <defaults>
</compile_context>

<pallas_src>
import functools

import jax
import jax.numpy as jnp
from jax.experimental import pallas as pl
from jax.experimental.pallas import tpu as pltpu


# Sub-pixel decomposition of ConvTranspose2d(k=3, stride=2, padding=1,
# output_padding=1): output phase (pi, pj) = y[2m+pi, 2n+pj] only needs input
# taps x[m+dh, n+dw], each hitting exactly one original kernel entry (kh, kw).
# Entries are (dh, dw, kh, kw); phase index p = 2*pi + pj.
_PHASE_TAPS = (
    ((0, 0, 1, 1),),                                           # (even, even)
    ((0, 0, 1, 2), (0, 1, 1, 0)),                              # (even, odd)
    ((0, 0, 2, 1), (1, 0, 0, 1)),                              # (odd,  even)
    ((0, 0, 2, 2), (0, 1, 2, 0), (1, 0, 0, 2), (1, 1, 0, 0)),  # (odd,  odd)
)


def _decoder_fused_kernel(W, x_ref, w1_ref, b1_ref, w2_ref, b2_ref,
                          wt_ref, bt_ref, cm_ref, o_ref):
    # x_ref : (1, 2C, H*W) f32        input image, channels on sublanes
    # w*_ref: (3, 3, Cout, Cin) bf16
    # b*_ref: (Cout, 1) f32
    # cm_ref: (2, H*W) f32            column masks (left / right image border)
    # o_ref : (1, 4*C//2, H*W) f32    4 sub-pixel phases, stacked on sublanes
    HW = x_ref.shape[2]

    cm = cm_ref[...]
    mask_l = cm[0:1, :]          # zero at image column w == 0
    mask_r = cm[1:2, :]          # zero at image column w == W-1

    def pad_cols(a):
        # (C, H*W) -> (C, H*W + 2*(W+1)): one zero image row plus one extra
        # zero on each side.  Together with the column masks this realizes
        # "same" zero padding entirely in the flat spatial-on-lanes layout.
        z = jnp.zeros((a.shape[0], W + 1), a.dtype)
        return jnp.concatenate([z, a, z], axis=1)

    def conv3x3_relu(P, w_ref, b_ref):
        # 3x3 "same" conv + bias + ReLU as 9 shifted (Cout,Cin)@(Cin,H*W)
        # MXU matmuls on the flat buffer; contributions grouped by dx so the
        # border masks are applied once per group.
        groups = []
        for dx in range(3):
            g = None
            for dy in range(3):
                s = dy * W + dx
                c = jnp.dot(w_ref[dy, dx], P[:, s:s + HW],
                            preferred_element_type=jnp.float32)
                g = c if g is None else g + c
            groups.append(g)
        pre = groups[0] * mask_l + groups[1] + groups[2] * mask_r + b_ref[...]
        return jnp.maximum(pre, 0.0)

    # conv_relu[0] and conv_relu[2]
    x = x_ref[0].astype(jnp.bfloat16)                        # (2C, H*W)
    a1 = conv3x3_relu(pad_cols(x), w1_ref, b1_ref)           # (C, H*W) f32
    a2 = conv3x3_relu(pad_cols(a1.astype(jnp.bfloat16)), w2_ref, b2_ref)

    # upconv_relu: ConvTranspose2d via the 4-phase decomposition.
    P2 = pad_cols(a2.astype(jnp.bfloat16))
    bt = bt_ref[...]
    phases = []
    for taps in _PHASE_TAPS:
        inner = None                                         # dw == 0 taps
        edge = None                                          # dw == 1 taps (need mask_r)
        for dh, dw, kh, kw in taps:
            s = (W + 1) + dh * W + dw
            c = jnp.dot(wt_ref[kh, kw], P2[:, s:s + HW],
                        preferred_element_type=jnp.float32)
            if dw == 0:
                inner = c if inner is None else inner + c
            else:
                edge = c if edge is None else edge + c
        pre = inner + bt if edge is None else inner + edge * mask_r + bt
        phases.append(jnp.maximum(pre, 0.0))                 # (Co, H*W)

    # Single lane-dense, sublane-full writeback: (4*Co, H*W).
    o_ref[0] = jnp.concatenate(phases, axis=0)


def init_decoder_params(key, channels):
    """Deterministic synthetic init mirroring the PyTorch layer shapes."""
    c = channels
    ks = jax.random.split(key, 6)

    def u(k, shape, fan_in):
        bound = 1.0 / jnp.sqrt(jnp.float32(fan_in))
        return jax.random.uniform(k, shape, jnp.float32, -bound, bound)

    return {
        # nn.Conv2d(2c, c, 3): weight OIHW (c, 2c, 3, 3), bias (c,)
        "w1": u(ks[0], (c, 2 * c, 3, 3), 2 * c * 9),
        "b1": u(ks[1], (c,), 2 * c * 9),
        # nn.Conv2d(c, c, 3)
        "w2": u(ks[2], (c, c, 3, 3), c * 9),
        "b2": u(ks[3], (c,), c * 9),
        # nn.ConvTranspose2d(c, c//2, 3): weight (Cin, Cout, kh, kw)
        "wt": u(ks[4], (c, c // 2, 3, 3), c * 9),
        "bt": u(ks[5], (c // 2,), c * 9),
    }


def prepare_decoder_params(params, H, W):
    """One-time layout prep (hoisted out of the forward pass).

    Weights go to (kh, kw, Cout, Cin) bf16 so the kernel can feed the MXU
    directly; biases become (Cout, 1) f32 columns; the two image-column
    border masks are precomputed as a (2, H*W) f32 array.
    """
    col = jnp.arange(W)
    mask_l = jnp.tile((col > 0).astype(jnp.float32), H)        # 0 at w == 0
    mask_r = jnp.tile((col < W - 1).astype(jnp.float32), H)    # 0 at w == W-1
    return {
        "w1": jnp.transpose(params["w1"], (2, 3, 0, 1)).astype(jnp.bfloat16),
        "b1": params["b1"].reshape(-1, 1).astype(jnp.float32),
        "w2": jnp.transpose(params["w2"], (2, 3, 0, 1)).astype(jnp.bfloat16),
        "b2": params["b2"].reshape(-1, 1).astype(jnp.float32),
        "wt": jnp.transpose(params["wt"], (2, 3, 1, 0)).astype(jnp.bfloat16),
        "bt": params["bt"].reshape(-1, 1).astype(jnp.float32),
        "colmask": jnp.stack([mask_l, mask_r]),                 # (2, H*W)
    }


def decoder_forward(prep, x_nchw):
    """x_nchw: (N, 2*channels, H, W) f32 -> (N, channels//2, 2H, 2W) f32."""
    N, c2, H, W = x_nchw.shape
    HW = H * W
    C = prep["b1"].shape[0]
    Co = prep["bt"].shape[0]

    x_flat = x_nchw.reshape(N, c2, HW)        # free: contiguous reshape

    out = pl.pallas_call(
        functools.partial(_decoder_fused_kernel, W),
        out_shape=jax.ShapeDtypeStruct((N, 4 * Co, HW), jnp.float32),
        grid=(N,),
        in_specs=[
            pl.BlockSpec((1, c2, HW), lambda n: (n, 0, 0)),
            pl.BlockSpec((3, 3, C, c2), lambda n: (0, 0, 0, 0)),
            pl.BlockSpec((C, 1), lambda n: (0, 0)),
            pl.BlockSpec((3, 3, C, C), lambda n: (0, 0, 0, 0)),
            pl.BlockSpec((C, 1), lambda n: (0, 0)),
            pl.BlockSpec((3, 3, Co, C), lambda n: (0, 0, 0, 0)),
            pl.BlockSpec((Co, 1), lambda n: (0, 0)),
            pl.BlockSpec((2, HW), lambda n: (0, 0)),
        ],
        out_specs=pl.BlockSpec((1, 4 * Co, HW), lambda n: (n, 0, 0)),
        compiler_params=pltpu.CompilerParams(
            dimension_semantics=("parallel",)),
    )(x_flat, prep["w1"], prep["b1"], prep["w2"], prep["b2"],
      prep["wt"], prep["bt"], prep["colmask"])

    # Depth-to-space: (N, (2*pi+pj)*Co + c, H*W) -> (N, Co, 2H, 2W).  Pure
    # layout plumbing in the wrapper so the kernel's HBM stores stay
    # lane-dense and sublane-full.
    y = out.reshape(N, 2, 2, Co, H, W)
    y = jnp.transpose(y, (0, 3, 4, 1, 5, 2))
    return y.reshape(N, Co, 2 * H, 2 * W)


def decoder_reference(params, x):
    """Pure-JAX/XLA reference (f32) of the PyTorch Decoder forward."""
    a = jax.lax.conv_general_dilated(
        x, params["w1"], (1, 1), ((1, 1), (1, 1)),
        dimension_numbers=("NCHW", "OIHW", "NCHW"))
    a = jax.nn.relu(a + params["b1"][None, :, None, None])
    a = jax.lax.conv_general_dilated(
        a, params["w2"], (1, 1), ((1, 1), (1, 1)),
        dimension_numbers=("NCHW", "OIHW", "NCHW"))
    a = jax.nn.relu(a + params["b2"][None, :, None, None])
    # ConvTranspose2d(s=2, p=1, out_p=1) == dilate-by-2 + pad (1,2) + valid
    # conv with the flipped, (Cout,Cin)-ordered kernel.
    wt = jnp.transpose(params["wt"], (1, 0, 2, 3))[:, :, ::-1, ::-1]
    y = jax.lax.conv_general_dilated(
        a, wt, (1, 1), ((1, 2), (1, 2)), lhs_dilation=(2, 2),
        dimension_numbers=("NCHW", "OIHW", "NCHW"))
    return jax.nn.relu(y + params["bt"][None, :, None, None])


if __name__ == "__main__":
    channels = 4
    N, H, W = 2, 16, 16

    key = jax.random.PRNGKey(0)
    k_param, k_x = jax.random.split(key)
    params = init_decoder_params(k_param, channels)
    prep = prepare_decoder_params(params, H, W)
    x = jax.random.normal(k_x, (N, 2 * channels, H, W), jnp.float32)

    out = jax.jit(decoder_forward)(prep, x)
    jax.block_until_ready(out)

    assert out.shape == (N, channels // 2, 2 * H, 2 * W), out.shape
    assert out.dtype == jnp.float32
    assert bool(jnp.all(out >= 0.0))          # ReLU at the end

    # Numerical check vs. the XLA reference (loose tolerance: bf16 MXU inputs).
    ref = decoder_reference(params, x)
    assert bool(jnp.allclose(out, ref, atol=5e-2, rtol=5e-2)), \
        float(jnp.max(jnp.abs(out - ref)))

    print("KERNEL_OK")
</pallas_src>

<mosaic_0001>
module attributes {stable_mosaic.version = 11 : i64} {
  func.func @_decoder_fused_kernel(%arg0: i32, %arg1: memref<1x8x256xf32, #tpu.memory_space<vmem>>, %arg2: memref<3x3x4x8xbf16, #tpu.memory_space<vmem>>, %arg3: memref<4x1xf32, #tpu.memory_space<vmem>>, %arg4: memref<3x3x4x4xbf16, #tpu.memory_space<vmem>>, %arg5: memref<4x1xf32, #tpu.memory_space<vmem>>, %arg6: memref<3x3x2x4xbf16, #tpu.memory_space<vmem>>, %arg7: memref<2x1xf32, #tpu.memory_space<vmem>>, %arg8: memref<2x256xf32, #tpu.memory_space<vmem>>, %arg9: memref<1x8x256xf32, #tpu.memory_space<vmem>>) attributes {dimension_semantics = [#tpu.dimension_semantics<parallel>], iteration_bounds = array<i64: 2>, scalar_prefetch = 0 : i64, scratch_operands = 0 : i64, tpu.core_type = #tpu.core_type<tc>, window_params = [{transform_indices = @transform_0, window_bounds = array<i64: 1, 8, 256>}, {pipeline_mode = #tpu.pipeline_mode<synchronous>, transform_indices = @transform_1, window_bounds = array<i64: 3, 3, 4, 8>}, {pipeline_mode = #tpu.pipeline_mode<synchronous>, transform_indices = @transform_2, window_bounds = array<i64: 4, 1>}, {pipeline_mode = #tpu.pipeline_mode<synchronous>, transform_indices = @transform_3, window_bounds = array<i64: 3, 3, 4, 4>}, {pipeline_mode = #tpu.pipeline_mode<synchronous>, transform_indices = @transform_4, window_bounds = array<i64: 4, 1>}, {pipeline_mode = #tpu.pipeline_mode<synchronous>, transform_indices = @transform_5, window_bounds = array<i64: 3, 3, 2, 4>}, {pipeline_mode = #tpu.pipeline_mode<synchronous>, transform_indices = @transform_6, window_bounds = array<i64: 2, 1>}, {pipeline_mode = #tpu.pipeline_mode<synchronous>, transform_indices = @transform_7, window_bounds = array<i64: 2, 256>}, {transform_indices = @transform_8, window_bounds = array<i64: 1, 8, 256>}]} {
    %c0 = arith.constant 0 : index
    %c0_0 = arith.constant 0 : index
    %0 = vector.load %arg8[%c0, %c0_0] : memref<2x256xf32, #tpu.memory_space<vmem>>, vector<2x256xf32>
    %1 = vector.extract_strided_slice %0 {offsets = [0, 0], sizes = [1, 256], strides = [1, 1]} : vector<2x256xf32> to vector<1x256xf32>
    %2 = vector.extract_strided_slice %0 {offsets = [1, 0], sizes = [1, 256], strides = [1, 1]} : vector<2x256xf32> to vector<1x256xf32>
    %c0_1 = arith.constant 0 : index
    %c0_2 = arith.constant 0 : index
    %c0_3 = arith.constant 0 : index
    %3 = vector.load %arg1[%c0_1, %c0_2, %c0_3] : memref<1x8x256xf32, #tpu.memory_space<vmem>>, vector<1x8x256xf32>
    %4 = vector.shape_cast %3 : vector<1x8x256xf32> to vector<8x256xf32>
    %5 = arith.truncf %4 : vector<8x256xf32> to vector<8x256xbf16>
    %cst = arith.constant 0.000000e+00 : bf16
    %6 = vector.broadcast %cst : bf16 to vector<8x17xbf16>
    %7 = tpu.concatenate %6, %5, %6 in 1 : vector<8x17xbf16>, vector<8x256xbf16>, vector<8x17xbf16> -> vector<8x290xbf16>
    %c0_4 = arith.constant 0 : index
    %c0_5 = arith.constant 0 : index
    %c0_6 = arith.constant 0 : index
    %c0_7 = arith.constant 0 : index
    %8 = vector.load %arg2[%c0_4, %c0_5, %c0_6, %c0_7] : memref<3x3x4x8xbf16, #tpu.memory_space<vmem>>, vector<1x1x4x8xbf16>
    %9 = vector.shape_cast %8 : vector<1x1x4x8xbf16> to vector<4x8xbf16>
    %10 = vector.extract_strided_slice %7 {offsets = [0, 0], sizes = [8, 256], strides = [1, 1]} : vector<8x290xbf16> to vector<8x256xbf16>
    %cst_8 = arith.constant dense<0.000000e+00> : vector<4x256xf32>
    %11 = tpu.matmul %9, %10, %cst_8 {dimension_numbers = #tpu.dot_dimension_numbers<[1], [0], [0], [1], [0, 0, 1, 1], [], []>} : vector<4x8xbf16>, vector<8x256xbf16>, vector<4x256xf32> -> vector<4x256xf32>
    %c1 = arith.constant 1 : index
    %c0_9 = arith.constant 0 : index
    %c0_10 = arith.constant 0 : index
    %c0_11 = arith.constant 0 : index
    %12 = vector.load %arg2[%c1, %c0_9, %c0_10, %c0_11] : memref<3x3x4x8xbf16, #tpu.memory_space<vmem>>, vector<1x1x4x8xbf16>
    %13 = vector.shape_cast %12 : vector<1x1x4x8xbf16> to vector<4x8xbf16>
    %14 = vector.extract_strided_slice %7 {offsets = [0, 16], sizes = [8, 256], strides = [1, 1]} : vector<8x290xbf16> to vector<8x256xbf16>
    %cst_12 = arith.constant dense<0.000000e+00> : vector<4x256xf32>
    %15 = tpu.matmul %13, %14, %cst_12 {dimension_numbers = #tpu.dot_dimension_numbers<[1], [0], [0], [1], [0, 0, 1, 1], [], []>} : vector<4x8xbf16>, vector<8x256xbf16>, vector<4x256xf32> -> vector<4x256xf32>
    %16 = arith.addf %11, %15 : vector<4x256xf32>
    %c2 = arith.constant 2 : index
    %c0_13 = arith.constant 0 : index
    %c0_14 = arith.constant 0 : index
    %c0_15 = arith.constant 0 : index
    %17 = vector.load %arg2[%c2, %c0_13, %c0_14, %c0_15] : memref<3x3x4x8xbf16, #tpu.memory_space<vmem>>, vector<1x1x4x8xbf16>
    %18 = vector.shape_cast %17 : vector<1x1x4x8xbf16> to vector<4x8xbf16>
    %19 = vector.extract_strided_slice %7 {offsets = [0, 32], sizes = [8, 256], strides = [1, 1]} : vector<8x290xbf16> to vector<8x256xbf16>
    %cst_16 = arith.constant dense<0.000000e+00> : vector<4x256xf32>
    %20 = tpu.matmul %18, %19, %cst_16 {dimension_numbers = #tpu.dot_dimension_numbers<[1], [0], [0], [1], [0, 0, 1, 1], [], []>} : vector<4x8xbf16>, vector<8x256xbf16>, vector<4x256xf32> -> vector<4x256xf32>
    %21 = arith.addf %16, %20 : vector<4x256xf32>
    %c0_17 = arith.constant 0 : index
    %c1_18 = arith.constant 1 : index
    %c0_19 = arith.constant 0 : index
    %c0_20 = arith.constant 0 : index
    %22 = vector.load %arg2[%c0_17, %c1_18, %c0_19, %c0_20] : memref<3x3x4x8xbf16, #tpu.memory_space<vmem>>, vector<1x1x4x8xbf16>
    %23 = vector.shape_cast %22 : vector<1x1x4x8xbf16> to vector<4x8xbf16>
    %24 = vector.extract_strided_slice %7 {offsets = [0, 1], sizes = [8, 256], strides = [1, 1]} : vector<8x290xbf16> to vector<8x256xbf16>
    %cst_21 = arith.constant dense<0.000000e+00> : vector<4x256xf32>
    %25 = tpu.matmul %23, %24, %cst_21 {dimension_numbers = #tpu.dot_dimension_numbers<[1], [0], [0], [1], [0, 0, 1, 1], [], []>} : vector<4x8xbf16>, vector<8x256xbf16>, vector<4x256xf32> -> vector<4x256xf32>
    %c1_22 = arith.constant 1 : index
    %c1_23 = arith.constant 1 : index
    %c0_24 = arith.constant 0 : index
    %c0_25 = arith.constant 0 : index
    %26 = vector.load %arg2[%c1_22, %c1_23, %c0_24, %c0_25] : memref<3x3x4x8xbf16, #tpu.memory_space<vmem>>, vector<1x1x4x8xbf16>
    %27 = vector.shape_cast %26 : vector<1x1x4x8xbf16> to vector<4x8xbf16>
    %28 = vector.extract_strided_slice %7 {offsets = [0, 17], sizes = [8, 256], strides = [1, 1]} : vector<8x290xbf16> to vector<8x256xbf16>
    %cst_26 = arith.constant dense<0.000000e+00> : vector<4x256xf32>
    %29 = tpu.matmul %27, %28, %cst_26 {dimension_numbers = #tpu.dot_dimension_numbers<[1], [0], [0], [1], [0, 0, 1, 1], [], []>} : vector<4x8xbf16>, vector<8x256xbf16>, vector<4x256xf32> -> vector<4x256xf32>
    %30 = arith.addf %25, %29 : vector<4x256xf32>
    %c2_27 = arith.constant 2 : index
    %c1_28 = arith.constant 1 : index
    %c0_29 = arith.constant 0 : index
    %c0_30 = arith.constant 0 : index
    %31 = vector.load %arg2[%c2_27, %c1_28, %c0_29, %c0_30] : memref<3x3x4x8xbf16, #tpu.memory_space<vmem>>, vector<1x1x4x8xbf16>
    %32 = vector.shape_cast %31 : vector<1x1x4x8xbf16> to vector<4x8xbf16>
    %33 = vector.extract_strided_slice %7 {offsets = [0, 33], sizes = [8, 256], strides = [1, 1]} : vector<8x290xbf16> to vector<8x256xbf16>
    %cst_31 = arith.constant dense<0.000000e+00> : vector<4x256xf32>
    %34 = tpu.matmul %32, %33, %cst_31 {dimension_numbers = #tpu.dot_dimension_numbers<[1], [0], [0], [1], [0, 0, 1, 1], [], []>} : vector<4x8xbf16>, vector<8x256xbf16>, vector<4x256xf32> -> vector<4x256xf32>
    %35 = arith.addf %30, %34 : vector<4x256xf32>
    %c0_32 = arith.constant 0 : index
    %c2_33 = arith.constant 2 : index
    %c0_34 = arith.constant 0 : index
    %c0_35 = arith.constant 0 : index
    %36 = vector.load %arg2[%c0_32, %c2_33, %c0_34, %c0_35] : memref<3x3x4x8xbf16, #tpu.memory_space<vmem>>, vector<1x1x4x8xbf16>
    %37 = vector.shape_cast %36 : vector<1x1x4x8xbf16> to vector<4x8xbf16>
    %38 = vector.extract_strided_slice %7 {offsets = [0, 2], sizes = [8, 256], strides = [1, 1]} : vector<8x290xbf16> to vector<8x256xbf16>
    %cst_36 = arith.constant dense<0.000000e+00> : vector<4x256xf32>
    %39 = tpu.matmul %37, %38, %cst_36 {dimension_numbers = #tpu.dot_dimension_numbers<[1], [0], [0], [1], [0, 0, 1, 1], [], []>} : vector<4x8xbf16>, vector<8x256xbf16>, vector<4x256xf32> -> vector<4x256xf32>
    %c1_37 = arith.constant 1 : index
    %c2_38 = arith.constant 2 : index
    %c0_39 = arith.constant 0 : index
    %c0_40 = arith.constant 0 : index
    %40 = vector.load %arg2[%c1_37, %c2_38, %c0_39, %c0_40] : memref<3x3x4x8xbf16, #tpu.memory_space<vmem>>, vector<1x1x4x8xbf16>
    %41 = vector.shape_cast %40 : vector<1x1x4x8xbf16> to vector<4x8xbf16>
    %42 = vector.extract_strided_slice %7 {offsets = [0, 18], sizes = [8, 256], strides = [1, 1]} : vector<8x290xbf16> to vector<8x256xbf16>
    %cst_41 = arith.constant dense<0.000000e+00> : vector<4x256xf32>
    %43 = tpu.matmul %41, %42, %cst_41 {dimension_numbers = #tpu.dot_dimension_numbers<[1], [0], [0], [1], [0, 0, 1, 1], [], []>} : vector<4x8xbf16>, vector<8x256xbf16>, vector<4x256xf32> -> vector<4x256xf32>
    %44 = arith.addf %39, %43 : vector<4x256xf32>
    %c2_42 = arith.constant 2 : index
    %c2_43 = arith.constant 2 : index
    %c0_44 = arith.constant 0 : index
    %c0_45 = arith.constant 0 : index
    %45 = vector.load %arg2[%c2_42, %c2_43, %c0_44, %c0_45] : memref<3x3x4x8xbf16, #tpu.memory_space<vmem>>, vector<1x1x4x8xbf16>
    %46 = vector.shape_cast %45 : vector<1x1x4x8xbf16> to vector<4x8xbf16>
    %47 = vector.extract_strided_slice %7 {offsets = [0, 34], sizes = [8, 256], strides = [1, 1]} : vector<8x290xbf16> to vector<8x256xbf16>
    %cst_46 = arith.constant dense<0.000000e+00> : vector<4x256xf32>
    %48 = tpu.matmul %46, %47, %cst_46 {dimension_numbers = #tpu.dot_dimension_numbers<[1], [0], [0], [1], [0, 0, 1, 1], [], []>} : vector<4x8xbf16>, vector<8x256xbf16>, vector<4x256xf32> -> vector<4x256xf32>
    %49 = arith.addf %44, %48 : vector<4x256xf32>
    %50 = vector.broadcast %1 : vector<1x256xf32> to vector<4x256xf32>
    %51 = arith.mulf %21, %50 : vector<4x256xf32>
    %52 = arith.addf %51, %35 : vector<4x256xf32>
    %53 = vector.broadcast %2 : vector<1x256xf32> to vector<4x256xf32>
    %54 = arith.mulf %49, %53 : vector<4x256xf32>
    %55 = arith.addf %52, %54 : vector<4x256xf32>
    %c0_47 = arith.constant 0 : index
    %c0_48 = arith.constant 0 : index
    %56 = vector.load %arg3[%c0_47, %c0_48] : memref<4x1xf32, #tpu.memory_space<vmem>>, vector<4x1xf32>
    %57 = vector.broadcast %56 : vector<4x1xf32> to vector<4x256xf32>
    %58 = arith.addf %55, %57 : vector<4x256xf32>
    %cst_49 = arith.constant 0.000000e+00 : f32
    %59 = vector.broadcast %cst_49 : f32 to vector<4x256xf32>
    %60 = arith.maximumf %58, %59 : vector<4x256xf32>
    %61 = arith.truncf %60 : vector<4x256xf32> to vector<4x256xbf16>
    %cst_50 = arith.constant 0.000000e+00 : bf16
    %62 = vector.broadcast %cst_50 : bf16 to vector<4x17xbf16>
    %63 = tpu.concatenate %62, %61, %62 in 1 : vector<4x17xbf16>, vector<4x256xbf16>, vector<4x17xbf16> -> vector<4x290xbf16>
    %c0_51 = arith.constant 0 : index
    %c0_52 = arith.constant 0 : index
    %c0_53 = arith.constant 0 : index
    %c0_54 = arith.constant 0 : index
    %64 = vector.load %arg4[%c0_51, %c0_52, %c0_53, %c0_54] : memref<3x3x4x4xbf16, #tpu.memory_space<vmem>>, vector<1x1x4x4xbf16>
    %65 = vector.shape_cast %64 : vector<1x1x4x4xbf16> to vector<4x4xbf16>
    %66 = vector.extract_strided_slice %63 {offsets = [0, 0], sizes = [4, 256], strides = [1, 1]} : vector<4x290xbf16> to vector<4x256xbf16>
    %cst_55 = arith.constant dense<0.000000e+00> : vector<4x256xf32>
    %67 = tpu.matmul %65, %66, %cst_55 {dimension_numbers = #tpu.dot_dimension_numbers<[1], [0], [0], [1], [0, 0, 1, 1], [], []>} : vector<4x4xbf16>, vector<4x256xbf16>, vector<4x256xf32> -> vector<4x256xf32>
    %c1_56 = arith.constant 1 : index
    %c0_57 = arith.constant 0 : index
    %c0_58 = arith.constant 0 : index
    %c0_59 = arith.constant 0 : index
    %68 = vector.load %arg4[%c1_56, %c0_57, %c0_58, %c0_59] : memref<3x3x4x4xbf16, #tpu.memory_space<vmem>>, vector<1x1x4x4xbf16>
    %69 = vector.shape_cast %68 : vector<1x1x4x4xbf16> to vector<4x4xbf16>
    %70 = vector.extract_strided_slice %63 {offsets = [0, 16], sizes = [4, 256], strides = [1, 1]} : vector<4x290xbf16> to vector<4x256xbf16>
    %cst_60 = arith.constant dense<0.000000e+00> : vector<4x256xf32>
    %71 = tpu.matmul %69, %70, %cst_60 {dimension_numbers = #tpu.dot_dimension_numbers<[1], [0], [0], [1], [0, 0, 1, 1], [], []>} : vector<4x4xbf16>, vector<4x256xbf16>, vector<4x256xf32> -> vector<4x256xf32>
    %72 = arith.addf %67, %71 : vector<4x256xf32>
    %c2_61 = arith.constant 2 : index
    %c0_62 = arith.constant 0 : index
    %c0_63 = arith.constant 0 : index
    %c0_64 = arith.constant 0 : index
    %73 = vector.load %arg4[%c2_61, %c0_62, %c0_63, %c0_64] : memref<3x3x4x4xbf16, #tpu.memory_space<vmem>>, vector<1x1x4x4xbf16>
    %74 = vector.shape_cast %73 : vector<1x1x4x4xbf16> to vector<4x4xbf16>
    %75 = vector.extract_strided_slice %63 {offsets = [0, 32], sizes = [4, 256], strides = [1, 1]} : vector<4x290xbf16> to vector<4x256xbf16>
    %cst_65 = arith.constant dense<0.000000e+00> : vector<4x256xf32>
    %76 = tpu.matmul %74, %75, %cst_65 {dimension_numbers = #tpu.dot_dimension_numbers<[1], [0], [0], [1], [0, 0, 1, 1], [], []>} : vector<4x4xbf16>, vector<4x256xbf16>, vector<4x256xf32> -> vector<4x256xf32>
    %77 = arith.addf %72, %76 : vector<4x256xf32>
    %c0_66 = arith.constant 0 : index
    %c1_67 = arith.constant 1 : index
    %c0_68 = arith.constant 0 : index
    %c0_69 = arith.constant 0 : index
    %78 = vector.load %arg4[%c0_66, %c1_67, %c0_68, %c0_69] : memref<3x3x4x4xbf16, #tpu.memory_space<vmem>>, vector<1x1x4x4xbf16>
    %79 = vector.shape_cast %78 : vector<1x1x4x4xbf16> to vector<4x4xbf16>
    %80 = vector.extract_strided_slice %63 {offsets = [0, 1], sizes = [4, 256], strides = [1, 1]} : vector<4x290xbf16> to vector<4x256xbf16>
    %cst_70 = arith.constant dense<0.000000e+00> : vector<4x256xf32>
    %81 = tpu.matmul %79, %80, %cst_70 {dimension_numbers = #tpu.dot_dimension_numbers<[1], [0], [0], [1], [0, 0, 1, 1], [], []>} : vector<4x4xbf16>, vector<4x256xbf16>, vector<4x256xf32> -> vector<4x256xf32>
    %c1_71 = arith.constant 1 : index
    %c1_72 = arith.constant 1 : index
    %c0_73 = arith.constant 0 : index
    %c0_74 = arith.constant 0 : index
    %82 = vector.load %arg4[%c1_71, %c1_72, %c0_73, %c0_74] : memref<3x3x4x4xbf16, #tpu.memory_space<vmem>>, vector<1x1x4x4xbf16>
    %83 = vector.shape_cast %82 : vector<1x1x4x4xbf16> to vector<4x4xbf16>
    %84 = vector.extract_strided_slice %63 {offsets = [0, 17], sizes = [4, 256], strides = [1, 1]} : vector<4x290xbf16> to vector<4x256xbf16>
    %cst_75 = arith.constant dense<0.000000e+00> : vector<4x256xf32>
    %85 = tpu.matmul %83, %84, %cst_75 {dimension_numbers = #tpu.dot_dimension_numbers<[1], [0], [0], [1], [0, 0, 1, 1], [], []>} : vector<4x4xbf16>, vector<4x256xbf16>, vector<4x256xf32> -> vector<4x256xf32>
    %86 = arith.addf %81, %85 : vector<4x256xf32>
    %c2_76 = arith.constant 2 : index
    %c1_77 = arith.constant 1 : index
    %c0_78 = arith.constant 0 : index
    %c0_79 = arith.constant 0 : index
    %87 = vector.load %arg4[%c2_76, %c1_77, %c0_78, %c0_79] : memref<3x3x4x4xbf16, #tpu.memory_space<vmem>>, vector<1x1x4x4xbf16>
    %88 = vector.shape_cast %87 : vector<1x1x4x4xbf16> to vector<4x4xbf16>
    %89 = vector.extract_strided_slice %63 {offsets = [0, 33], sizes = [4, 256], strides = [1, 1]} : vector<4x290xbf16> to vector<4x256xbf16>
    %cst_80 = arith.constant dense<0.000000e+00> : vector<4x256xf32>
    %90 = tpu.matmul %88, %89, %cst_80 {dimension_numbers = #tpu.dot_dimension_numbers<[1], [0], [0], [1], [0, 0, 1, 1], [], []>} : vector<4x4xbf16>, vector<4x256xbf16>, vector<4x256xf32> -> vector<4x256xf32>
    %91 = arith.addf %86, %90 : vector<4x256xf32>
    %c0_81 = arith.constant 0 : index
    %c2_82 = arith.constant 2 : index
    %c0_83 = arith.constant 0 : index
    %c0_84 = arith.constant 0 : index
    %92 = vector.load %arg4[%c0_81, %c2_82, %c0_83, %c0_84] : memref<3x3x4x4xbf16, #tpu.memory_space<vmem>>, vector<1x1x4x4xbf16>
    %93 = vector.shape_cast %92 : vector<1x1x4x4xbf16> to vector<4x4xbf16>
    %94 = vector.extract_strided_slice %63 {offsets = [0, 2], sizes = [4, 256], strides = [1, 1]} : vector<4x290xbf16> to vector<4x256xbf16>
    %cst_85 = arith.constant dense<0.000000e+00> : vector<4x256xf32>
    %95 = tpu.matmul %93, %94, %cst_85 {dimension_numbers = #tpu.dot_dimension_numbers<[1], [0], [0], [1], [0, 0, 1, 1], [], []>} : vector<4x4xbf16>, vector<4x256xbf16>, vector<4x256xf32> -> vector<4x256xf32>
    %c1_86 = arith.constant 1 : index
    %c2_87 = arith.constant 2 : index
    %c0_88 = arith.constant 0 : index
    %c0_89 = arith.constant 0 : index
    %96 = vector.load %arg4[%c1_86, %c2_87, %c0_88, %c0_89] : memref<3x3x4x4xbf16, #tpu.memory_space<vmem>>, vector<1x1x4x4xbf16>
    %97 = vector.shape_cast %96 : vector<1x1x4x4xbf16> to vector<4x4xbf16>
    %98 = vector.extract_strided_slice %63 {offsets = [0, 18], sizes = [4, 256], strides = [1, 1]} : vector<4x290xbf16> to vector<4x256xbf16>
    %cst_90 = arith.constant dense<0.000000e+00> : vector<4x256xf32>
    %99 = tpu.matmul %97, %98, %cst_90 {dimension_numbers = #tpu.dot_dimension_numbers<[1], [0], [0], [1], [0, 0, 1, 1], [], []>} : vector<4x4xbf16>, vector<4x256xbf16>, vector<4x256xf32> -> vector<4x256xf32>
    %100 = arith.addf %95, %99 : vector<4x256xf32>
    %c2_91 = arith.constant 2 : index
    %c2_92 = arith.constant 2 : index
    %c0_93 = arith.constant 0 : index
    %c0_94 = arith.constant 0 : index
    %101 = vector.load %arg4[%c2_91, %c2_92, %c0_93, %c0_94] : memref<3x3x4x4xbf16, #tpu.memory_space<vmem>>, vector<1x1x4x4xbf16>
    %102 = vector.shape_cast %101 : vector<1x1x4x4xbf16> to vector<4x4xbf16>
    %103 = vector.extract_strided_slice %63 {offsets = [0, 34], sizes = [4, 256], strides = [1, 1]} : vector<4x290xbf16> to vector<4x256xbf16>
    %cst_95 = arith.constant dense<0.000000e+00> : vector<4x256xf32>
    %104 = tpu.matmul %102, %103, %cst_95 {dimension_numbers = #tpu.dot_dimension_numbers<[1], [0], [0], [1], [0, 0, 1, 1], [], []>} : vector<4x4xbf16>, vector<4x256xbf16>, vector<4x256xf32> -> vector<4x256xf32>
    %105 = arith.addf %100, %104 : vector<4x256xf32>
    %106 = vector.broadcast %1 : vector<1x256xf32> to vector<4x256xf32>
    %107 = arith.mulf %77, %106 : vector<4x256xf32>
    %108 = arith.addf %107, %91 : vector<4x256xf32>
    %109 = vector.broadcast %2 : vector<1x256xf32> to vector<4x256xf32>
    %110 = arith.mulf %105, %109 : vector<4x256xf32>
    %111 = arith.addf %108, %110 : vector<4x256xf32>
    %c0_96 = arith.constant 0 : index
    %c0_97 = arith.constant 0 : index
    %112 = vector.load %arg5[%c0_96, %c0_97] : memref<4x1xf32, #tpu.memory_space<vmem>>, vector<4x1xf32>
    %113 = vector.broadcast %112 : vector<4x1xf32> to vector<4x256xf32>
    %114 = arith.addf %111, %113 : vector<4x256xf32>
    %cst_98 = arith.constant 0.000000e+00 : f32
    %115 = vector.broadcast %cst_98 : f32 to vector<4x256xf32>
    %116 = arith.maximumf %114, %115 : vector<4x256xf32>
    %117 = arith.truncf %116 : vector<4x256xf32> to vector<4x256xbf16>
    %cst_99 = arith.constant 0.000000e+00 : bf16
    %118 = vector.broadcast %cst_99 : bf16 to vector<4x17xbf16>
    %119 = tpu.concatenate %118, %117, %118 in 1 : vector<4x17xbf16>, vector<4x256xbf16>, vector<4x17xbf16> -> vector<4x290xbf16>
    %c0_100 = arith.constant 0 : index
    %c0_101 = arith.constant 0 : index
    %120 = vector.load %arg7[%c0_100, %c0_101] : memref<2x1xf32, #tpu.memory_space<vmem>>, vector<2x1xf32>
    %c1_102 = arith.constant 1 : index
    %c1_103 = arith.constant 1 : index
    %c0_104 = arith.constant 0 : index
    %c0_105 = arith.constant 0 : index
    %121 = vector.load %arg6[%c1_102, %c1_103, %c0_104, %c0_105] : memref<3x3x2x4xbf16, #tpu.memory_space<vmem>>, vector<1x1x2x4xbf16>
    %122 = vector.shape_cast %121 : vector<1x1x2x4xbf16> to vector<2x4xbf16>
    %123 = vector.extract_strided_slice %119 {offsets = [0, 17], sizes = [4, 256], strides = [1, 1]} : vector<4x290xbf16> to vector<4x256xbf16>
    %cst_106 = arith.constant dense<0.000000e+00> : vector<2x256xf32>
    %124 = tpu.matmul %122, %123, %cst_106 {dimension_numbers = #tpu.dot_dimension_numbers<[1], [0], [0], [1], [0, 0, 1, 1], [], []>} : vector<2x4xbf16>, vector<4x256xbf16>, vector<2x256xf32> -> vector<2x256xf32>
    %125 = vector.broadcast %120 : vector<2x1xf32> to vector<2x256xf32>
    %126 = arith.addf %124, %125 : vector<2x256xf32>
    %cst_107 = arith.constant 0.000000e+00 : f32
    %127 = vector.broadcast %cst_107 : f32 to vector<2x256xf32>
    %128 = arith.maximumf %126, %127 : vector<2x256xf32>
    %c1_108 = arith.constant 1 : index
    %c2_109 = arith.constant 2 : index
    %c0_110 = arith.constant 0 : index
    %c0_111 = arith.constant 0 : index
    %129 = vector.load %arg6[%c1_108, %c2_109, %c0_110, %c0_111] : memref<3x3x2x4xbf16, #tpu.memory_space<vmem>>, vector<1x1x2x4xbf16>
    %130 = vector.shape_cast %129 : vector<1x1x2x4xbf16> to vector<2x4xbf16>
    %131 = vector.extract_strided_slice %119 {offsets = [0, 17], sizes = [4, 256], strides = [1, 1]} : vector<4x290xbf16> to vector<4x256xbf16>
    %cst_112 = arith.constant dense<0.000000e+00> : vector<2x256xf32>
    %132 = tpu.matmul %130, %131, %cst_112 {dimension_numbers = #tpu.dot_dimension_numbers<[1], [0], [0], [1], [0, 0, 1, 1], [], []>} : vector<2x4xbf16>, vector<4x256xbf16>, vector<2x256xf32> -> vector<2x256xf32>
    %c1_113 = arith.constant 1 : index
    %c0_114 = arith.constant 0 : index
    %c0_115 = arith.constant 0 : index
    %c0_116 = arith.constant 0 : index
    %133 = vector.load %arg6[%c1_113, %c0_114, %c0_115, %c0_116] : memref<3x3x2x4xbf16, #tpu.memory_space<vmem>>, vector<1x1x2x4xbf16>
    %134 = vector.shape_cast %133 : vector<1x1x2x4xbf16> to vector<2x4xbf16>
    %135 = vector.extract_strided_slice %119 {offsets = [0, 18], sizes = [4, 256], strides = [1, 1]} : vector<4x290xbf16> to vector<4x256xbf16>
    %cst_117 = arith.constant dense<0.000000e+00> : vector<2x256xf32>
    %136 = tpu.matmul %134, %135, %cst_117 {dimension_numbers = #tpu.dot_dimension_numbers<[1], [0], [0], [1], [0, 0, 1, 1], [], []>} : vector<2x4xbf16>, vector<4x256xbf16>, vector<2x256xf32> -> vector<2x256xf32>
    %137 = vector.broadcast %2 : vector<1x256xf32> to vector<2x256xf32>
    %138 = arith.mulf %136, %137 : vector<2x256xf32>
    %139 = arith.addf %132, %138 : vector<2x256xf32>
    %140 = vector.broadcast %120 : vector<2x1xf32> to vector<2x256xf32>
    %141 = arith.addf %139, %140 : vector<2x256xf32>
    %cst_118 = arith.constant 0.000000e+00 : f32
    %142 = vector.broadcast %cst_118 : f32 to vector<2x256xf32>
    %143 = arith.maximumf %141, %142 : vector<2x256xf32>
    %c2_119 = arith.constant 2 : index
    %c1_120 = arith.constant 1 : index
    %c0_121 = arith.constant 0 : index
    %c0_122 = arith.constant 0 : index
    %144 = vector.load %arg6[%c2_119, %c1_120, %c0_121, %c0_122] : memref<3x3x2x4xbf16, #tpu.memory_space<vmem>>, vector<1x1x2x4xbf16>
    %145 = vector.shape_cast %144 : vector<1x1x2x4xbf16> to vector<2x4xbf16>
    %146 = vector.extract_strided_slice %119 {offsets = [0, 17], sizes = [4, 256], strides = [1, 1]} : vector<4x290xbf16> to vector<4x256xbf16>
    %cst_123 = arith.constant dense<0.000000e+00> : vector<2x256xf32>
    %147 = tpu.matmul %145, %146, %cst_123 {dimension_numbers = #tpu.dot_dimension_numbers<[1], [0], [0], [1], [0, 0, 1, 1], [], []>} : vector<2x4xbf16>, vector<4x256xbf16>, vector<2x256xf32> -> vector<2x256xf32>
    %c0_124 = arith.constant 0 : index
    %c1_125 = arith.constant 1 : index
    %c0_126 = arith.constant 0 : index
    %c0_127 = arith.constant 0 : index
    %148 = vector.load %arg6[%c0_124, %c1_125, %c0_126, %c0_127] : memref<3x3x2x4xbf16, #tpu.memory_space<vmem>>, vector<1x1x2x4xbf16>
    %149 = vector.shape_cast %148 : vector<1x1x2x4xbf16> to vector<2x4xbf16>
    %150 = vector.extract_strided_slice %119 {offsets = [0, 33], sizes = [4, 256], strides = [1, 1]} : vector<4x290xbf16> to vector<4x256xbf16>
    %cst_128 = arith.constant dense<0.000000e+00> : vector<2x256xf32>
    %151 = tpu.matmul %149, %150, %cst_128 {dimension_numbers = #tpu.dot_dimension_numbers<[1], [0], [0], [1], [0, 0, 1, 1], [], []>} : vector<2x4xbf16>, vector<4x256xbf16>, vector<2x256xf32> -> vector<2x256xf32>
    %152 = arith.addf %147, %151 : vector<2x256xf32>
    %153 = vector.broadcast %120 : vector<2x1xf32> to vector<2x256xf32>
    %154 = arith.addf %152, %153 : vector<2x256xf32>
    %cst_129 = arith.constant 0.000000e+00 : f32
    %155 = vector.broadcast %cst_129 : f32 to vector<2x256xf32>
    %156 = arith.maximumf %154, %155 : vector<2x256xf32>
    %c2_130 = arith.constant 2 : index
    %c2_131 = arith.constant 2 : index
    %c0_132 = arith.constant 0 : index
    %c0_133 = arith.constant 0 : index
    %157 = vector.load %arg6[%c2_130, %c2_131, %c0_132, %c0_133] : memref<3x3x2x4xbf16, #tpu.memory_space<vmem>>, vector<1x1x2x4xbf16>
    %158 = vector.shape_cast %157 : vector<1x1x2x4xbf16> to vector<2x4xbf16>
    %159 = vector.extract_strided_slice %119 {offsets = [0, 17], sizes = [4, 256], strides = [1, 1]} : vector<4x290xbf16> to vector<4x256xbf16>
    %cst_134 = arith.constant dense<0.000000e+00> : vector<2x256xf32>
    %160 = tpu.matmul %158, %159, %cst_134 {dimension_numbers = #tpu.dot_dimension_numbers<[1], [0], [0], [1], [0, 0, 1, 1], [], []>} : vector<2x4xbf16>, vector<4x256xbf16>, vector<2x256xf32> -> vector<2x256xf32>
    %c2_135 = arith.constant 2 : index
    %c0_136 = arith.constant 0 : index
    %c0_137 = arith.constant 0 : index
    %c0_138 = arith.constant 0 : index
    %161 = vector.load %arg6[%c2_135, %c0_136, %c0_137, %c0_138] : memref<3x3x2x4xbf16, #tpu.memory_space<vmem>>, vector<1x1x2x4xbf16>
    %162 = vector.shape_cast %161 : vector<1x1x2x4xbf16> to vector<2x4xbf16>
    %163 = vector.extract_strided_slice %119 {offsets = [0, 18], sizes = [4, 256], strides = [1, 1]} : vector<4x290xbf16> to vector<4x256xbf16>
    %cst_139 = arith.constant dense<0.000000e+00> : vector<2x256xf32>
    %164 = tpu.matmul %162, %163, %cst_139 {dimension_numbers = #tpu.dot_dimension_numbers<[1], [0], [0], [1], [0, 0, 1, 1], [], []>} : vector<2x4xbf16>, vector<4x256xbf16>, vector<2x256xf32> -> vector<2x256xf32>
    %c0_140 = arith.constant 0 : index
    %c2_141 = arith.constant 2 : index
    %c0_142 = arith.constant 0 : index
    %c0_143 = arith.constant 0 : index
    %165 = vector.load %arg6[%c0_140, %c2_141, %c0_142, %c0_143] : memref<3x3x2x4xbf16, #tpu.memory_space<vmem>>, vector<1x1x2x4xbf16>
    %166 = vector.shape_cast %165 : vector<1x1x2x4xbf16> to vector<2x4xbf16>
    %167 = vector.extract_strided_slice %119 {offsets = [0, 33], sizes = [4, 256], strides = [1, 1]} : vector<4x290xbf16> to vector<4x256xbf16>
    %cst_144 = arith.constant dense<0.000000e+00> : vector<2x256xf32>
    %168 = tpu.matmul %166, %167, %cst_144 {dimension_numbers = #tpu.dot_dimension_numbers<[1], [0], [0], [1], [0, 0, 1, 1], [], []>} : vector<2x4xbf16>, vector<4x256xbf16>, vector<2x256xf32> -> vector<2x256xf32>
    %169 = arith.addf %160, %168 : vector<2x256xf32>
    %c0_145 = arith.constant 0 : index
    %c0_146 = arith.constant 0 : index
    %c0_147 = arith.constant 0 : index
    %c0_148 = arith.constant 0 : index
    %170 = vector.load %arg6[%c0_145, %c0_146, %c0_147, %c0_148] : memref<3x3x2x4xbf16, #tpu.memory_space<vmem>>, vector<1x1x2x4xbf16>
    %171 = vector.shape_cast %170 : vector<1x1x2x4xbf16> to vector<2x4xbf16>
    %172 = vector.extract_strided_slice %119 {offsets = [0, 34], sizes = [4, 256], strides = [1, 1]} : vector<4x290xbf16> to vector<4x256xbf16>
    %cst_149 = arith.constant dense<0.000000e+00> : vector<2x256xf32>
    %173 = tpu.matmul %171, %172, %cst_149 {dimension_numbers = #tpu.dot_dimension_numbers<[1], [0], [0], [1], [0, 0, 1, 1], [], []>} : vector<2x4xbf16>, vector<4x256xbf16>, vector<2x256xf32> -> vector<2x256xf32>
    %174 = arith.addf %164, %173 : vector<2x256xf32>
    %175 = vector.broadcast %2 : vector<1x256xf32> to vector<2x256xf32>
    %176 = arith.mulf %174, %175 : vector<2x256xf32>
    %177 = arith.addf %169, %176 : vector<2x256xf32>
    %178 = vector.broadcast %120 : vector<2x1xf32> to vector<2x256xf32>
    %179 = arith.addf %177, %178 : vector<2x256xf32>
    %cst_150 = arith.constant 0.000000e+00 : f32
    %180 = vector.broadcast %cst_150 : f32 to vector<2x256xf32>
    %181 = arith.maximumf %179, %180 : vector<2x256xf32>
    %182 = tpu.concatenate %128, %143, %156, %181 in 0 : vector<2x256xf32>, vector<2x256xf32>, vector<2x256xf32>, vector<2x256xf32> -> vector<8x256xf32>
    %c0_151 = arith.constant 0 : index
    %c0_152 = arith.constant 0 : index
    %c0_153 = arith.constant 0 : index
    %183 = vector.load %arg9[%c0_151, %c0_152, %c0_153] : memref<1x8x256xf32, #tpu.memory_space<vmem>>, vector<1x8x256xf32>
    %184 = vector.shape_cast %183 : vector<1x8x256xf32> to vector<8x256xf32>
    %185 = vector.shape_cast %182 : vector<8x256xf32> to vector<1x8x256xf32>
    tpu.vector_store %arg9[%c0_151, %c0_152, %c0_153], %185 {strides = array<i32>} : memref<1x8x256xf32, #tpu.memory_space<vmem>>, vector<1x8x256xf32>,
    return
  }
  func.func @transform_0(%arg0: i32) -> (i32, i32, i32) {
    %c0_i32 = arith.constant 0 : i32
    %c0_i32_0 = arith.constant 0 : i32
    %c0_i32_1 = arith.constant 0 : i32
    return %arg0, %c0_i32, %c0_i32_0 : i32, i32, i32
  }
  func.func @transform_1(%arg0: i32) -> (i32, i32, i32, i32) {
    %c0_i32 = arith.constant 0 : i32
    %c0_i32_0 = arith.constant 0 : i32
    %c0_i32_1 = arith.constant 0 : i32
    %c0_i32_2 = arith.constant 0 : i32
    %c0_i32_3 = arith.constant 0 : i32
    return %c0_i32, %c0_i32_0, %c0_i32_1, %c0_i32_2 : i32, i32, i32, i32
  }
  func.func @transform_2(%arg0: i32) -> (i32, i32) {
    %c0_i32 = arith.constant 0 : i32
    %c0_i32_0 = arith.constant 0 : i32
    %c0_i32_1 = arith.constant 0 : i32
    return %c0_i32, %c0_i32_0 : i32, i32
  }
  func.func @transform_3(%arg0: i32) -> (i32, i32, i32, i32) {
    %c0_i32 = arith.constant 0 : i32
    %c0_i32_0 = arith.constant 0 : i32
    %c0_i32_1 = arith.constant 0 : i32
    %c0_i32_2 = arith.constant 0 : i32
    %c0_i32_3 = arith.constant 0 : i32
    return %c0_i32, %c0_i32_0, %c0_i32_1, %c0_i32_2 : i32, i32, i32, i32
  }
  func.func @transform_4(%arg0: i32) -> (i32, i32) {
    %c0_i32 = arith.constant 0 : i32
    %c0_i32_0 = arith.constant 0 : i32
    %c0_i32_1 = arith.constant 0 : i32
    return %c0_i32, %c0_i32_0 : i32, i32
  }
  func.func @transform_5(%arg0: i32) -> (i32, i32, i32, i32) {
    %c0_i32 = arith.constant 0 : i32
    %c0_i32_0 = arith.constant 0 : i32
    %c0_i32_1 = arith.constant 0 : i32
    %c0_i32_2 = arith.constant 0 : i32
    %c0_i32_3 = arith.constant 0 : i32
    return %c0_i32, %c0_i32_0, %c0_i32_1, %c0_i32_2 : i32, i32, i32, i32
  }
  func.func @transform_6(%arg0: i32) -> (i32, i32) {
    %c0_i32 = arith.constant 0 : i32
    %c0_i32_0 = arith.constant 0 : i32
    %c0_i32_1 = arith.constant 0 : i32
    return %c0_i32, %c0_i32_0 : i32, i32
  }
  func.func @transform_7(%arg0: i32) -> (i32, i32) {
    %c0_i32 = arith.constant 0 : i32
    %c0_i32_0 = arith.constant 0 : i32
    %c0_i32_1 = arith.constant 0 : i32
    return %c0_i32, %c0_i32_0 : i32, i32
  }
  func.func @transform_8(%arg0: i32) -> (i32, i32, i32) {
    %c0_i32 = arith.constant 0 : i32
    %c0_i32_0 = arith.constant 0 : i32
    %c0_i32_1 = arith.constant 0 : i32
    return %arg0, %c0_i32, %c0_i32_0 : i32, i32, i32
  }
}

</mosaic_0001>

<llo_original>
// kernel: decoder_forward.1
$region0: #{decoder_forward.1}
  #allocation0 [shape = 'u32[]', space=smem, size = 0x4, offset = 0x4, fixed_abs, tag = 'smem constant byte address 0x4 - core index']
  #allocation1 [shape = 'u32[144,128]{1,0:T(1,128)}', space=vmem, size = 0x12000, scoped, tag = 'internal scratch']
  %s0 = inlined_call_operand.vmem [shape: f32[2,8,256], index: 0, kind: input, shape index: {}]
  %s1 = inlined_call_operand.vmem [shape: bf16[3,3,4,8], index: 1, kind: input, shape index: {}]
  %s2 = inlined_call_operand.vmem [shape: f32[4,1], index: 2, kind: input, shape index: {}]
  %s3 = inlined_call_operand.vmem [shape: bf16[3,3,4,4], index: 3, kind: input, shape index: {}]
  %s4 = inlined_call_operand.vmem [shape: f32[4,1], index: 4, kind: input, shape index: {}]
  %s5 = inlined_call_operand.vmem [shape: bf16[3,3,2,4], index: 5, kind: input, shape index: {}]
  %s6 = inlined_call_operand.vmem [shape: f32[2,1], index: 6, kind: input, shape index: {}]
  %s7 = inlined_call_operand.vmem [shape: f32[2,256], index: 7, kind: input, shape index: {}]
  %s8 = inlined_call_operand.vmem [shape: f32[2,8,256], index: 8, kind: output, shape index: {}]
  %s9 = sld [smem:[#allocation0]]
  $region65: #{decoder_forward.1} parent=0
    _
  %s11 = ssub.s32 1, %s9
  %s12 = scalar_select 0, %s11, %s9
  loop: start=0, step=1, limit=4
  $region2: #{decoder_forward.1} parent=0 // loop_pre_header
    _
  $region3: #{decoder_forward.1} parent=0 // loop_header
    %s14 = sphi 0, %s18
    %p15 = scmp.ge.s32.totalorder %s14, 4
    %s24 = sphi 0, %s26
    %s27 = sphi 0, %s24
    %s28 = sphi 0, %s27
    %s44 = sphi 0, %s28
    %s48 = sphi 0, %s48
    %s50 = sphi 0, %s48
    %s51 = sphi 0, %s50
    %s65 = sphi 0, %s51
    %s69 = sphi 0, %s69
    %s71 = sphi 0, %s69
    %s72 = sphi 0, %s71
    %s86 = sphi 0, %s72
    %s90 = sphi 0, %s90
    %s92 = sphi 0, %s90
    %s93 = sphi 0, %s92
    %s107 = sphi 0, %s93
    %s111 = sphi 0, %s111
    %s113 = sphi 0, %s111
    %s114 = sphi 0, %s113
    %s128 = sphi 0, %s114
    %s132 = sphi 0, %s132
    %s134 = sphi 0, %s132
    %s135 = sphi 0, %s134
    %s149 = sphi 0, %s135
    %s153 = sphi 0, %s153
    %s155 = sphi 0, %s153
    %s156 = sphi 0, %s155
    %s170 = sphi 0, %s156
    %s174 = sphi 0, %s174
    %s176 = sphi 0, %s174
    %s177 = sphi 0, %s176
    %s191 = sphi 0, %s177
    %s197 = sphi 0, %s199
    %s200 = sphi 0, %s197
    %s201 = sphi 0, %s200
    %s217 = sphi 0, %s201
  $region4: #{decoder_forward.1} parent=0 // loop_header_branch
    %17 = sbr.rel (%p15) target = $region8
  $region5: #{decoder_forward.1} parent=0 // loop_body
    %s19 = ssub.s32 %s14, 1
    %s20 = ssub.s32 %s14, 2
    %s21 = sadd.s32 %s14, 1
    %s22 = ssub.s32 %s14, %s21
    %p23 = scmp.eq.s32.totalorder %s22, 0
    %s25 = sadd.s32 %s24, 1
    %s26 = scalar_select %p23, %s24, %s25
    %p29 = pneg %p23
    %p30 = scmp.eq.s32.totalorder %s14, 1
    %p31 = por %p29, %p30
    %p32 = scmp.ne.s32.totalorder %s24, %s27
    %p33 = scmp.eq.s32.totalorder %s14, 0
    %p34 = por %p32, %p33
    %p35 = scmp.ne.s32.totalorder %s24, %s27
    %p36 = scmp.eq.s32.totalorder %s19, 1
    %p37 = por %p35, %p36
    %p38 = scmp.ne.s32.totalorder %s27, %s28
    %p39 = scmp.eq.s32.totalorder %s19, 0
    %p40 = por %p38, %p39
    %p41 = scmp.ne.s32.totalorder %s27, %s28
    %p42 = scmp.eq.s32.totalorder %s20, 1
    %p43 = por %p41, %p42
    %p45 = scmp.ne.s32.totalorder %s28, %s44
    %p46 = scmp.eq.s32.totalorder %s20, 0
    %p47 = por %p45, %p46
    %s49 = sadd.s32 %s48, 1
    %p52 = scmp.eq.s32.totalorder %s14, 1
    %p53 = scmp.ne.s32.totalorder %s48, %s50
    %p54 = scmp.eq.s32.totalorder %s14, 0
    %p55 = por %p53, %p54
    %p56 = scmp.ne.s32.totalorder %s48, %s50
    %p57 = scmp.eq.s32.totalorder %s19, 1
    %p58 = por %p56, %p57
    %p59 = scmp.ne.s32.totalorder %s50, %s51
    %p60 = scmp.eq.s32.totalorder %s19, 0
    %p61 = por %p59, %p60
    %p62 = scmp.ne.s32.totalorder %s50, %s51
    %p63 = scmp.eq.s32.totalorder %s20, 1
    %p64 = por %p62, %p63
    %p66 = scmp.ne.s32.totalorder %s51, %s65
    %p67 = scmp.eq.s32.totalorder %s20, 0
    %p68 = por %p66, %p67
    %s70 = sadd.s32 %s69, 1
    %p73 = scmp.eq.s32.totalorder %s14, 1
    %p74 = scmp.ne.s32.totalorder %s69, %s71
    %p75 = scmp.eq.s32.totalorder %s14, 0
    %p76 = por %p74, %p75
    %p77 = scmp.ne.s32.totalorder %s69, %s71
    %p78 = scmp.eq.s32.totalorder %s19, 1
    %p79 = por %p77, %p78
    %p80 = scmp.ne.s32.totalorder %s71, %s72
    %p81 = scmp.eq.s32.totalorder %s19, 0
    %p82 = por %p80, %p81
    %p83 = scmp.ne.s32.totalorder %s71, %s72
    %p84 = scmp.eq.s32.totalorder %s20, 1
    %p85 = por %p83, %p84
    %p87 = scmp.ne.s32.totalorder %s72, %s86
    %p88 = scmp.eq.s32.totalorder %s20, 0
    %p89 = por %p87, %p88
    %s91 = sadd.s32 %s90, 1
    %p94 = scmp.eq.s32.totalorder %s14, 1
    %p95 = scmp.ne.s32.totalorder %s90, %s92
    %p96 = scmp.eq.s32.totalorder %s14, 0
    %p97 = por %p95, %p96
    %p98 = scmp.ne.s32.totalorder %s90, %s92
    %p99 = scmp.eq.s32.totalorder %s19, 1
    %p100 = por %p98, %p99
    %p101 = scmp.ne.s32.totalorder %s92, %s93
    %p102 = scmp.eq.s32.totalorder %s19, 0
    %p103 = por %p101, %p102
    %p104 = scmp.ne.s32.totalorder %s92, %s93
    %p105 = scmp.eq.s32.totalorder %s20, 1
    %p106 = por %p104, %p105
    %p108 = scmp.ne.s32.totalorder %s93, %s107
    %p109 = scmp.eq.s32.totalorder %s20, 0
    %p110 = por %p108, %p109
    %s112 = sadd.s32 %s111, 1
    %p115 = scmp.eq.s32.totalorder %s14, 1
    %p116 = scmp.ne.s32.totalorder %s111, %s113
    %p117 = scmp.eq.s32.totalorder %s14, 0
    %p118 = por %p116, %p117
    %p119 = scmp.ne.s32.totalorder %s111, %s113
    %p120 = scmp.eq.s32.totalorder %s19, 1
    %p121 = por %p119, %p120
    %p122 = scmp.ne.s32.totalorder %s113, %s114
    %p123 = scmp.eq.s32.totalorder %s19, 0
    %p124 = por %p122, %p123
    %p125 = scmp.ne.s32.totalorder %s113, %s114
    %p126 = scmp.eq.s32.totalorder %s20, 1
    %p127 = por %p125, %p126
    %p129 = scmp.ne.s32.totalorder %s114, %s128
    %p130 = scmp.eq.s32.totalorder %s20, 0
    %p131 = por %p129, %p130
    %s133 = sadd.s32 %s132, 1
    %p136 = scmp.eq.s32.totalorder %s14, 1
    %p137 = scmp.ne.s32.totalorder %s132, %s134
    %p138 = scmp.eq.s32.totalorder %s14, 0
    %p139 = por %p137, %p138
    %p140 = scmp.ne.s32.totalorder %s132, %s134
    %p141 = scmp.eq.s32.totalorder %s19, 1
    %p142 = por %p140, %p141
    %p143 = scmp.ne.s32.totalorder %s134, %s135
    %p144 = scmp.eq.s32.totalorder %s19, 0
    %p145 = por %p143, %p144
    %p146 = scmp.ne.s32.totalorder %s134, %s135
    %p147 = scmp.eq.s32.totalorder %s20, 1
    %p148 = por %p146, %p147
    %p150 = scmp.ne.s32.totalorder %s135, %s149
    %p151 = scmp.eq.s32.totalorder %s20, 0
    %p152 = por %p150, %p151
    %s154 = sadd.s32 %s153, 1
    %p157 = scmp.eq.s32.totalorder %s14, 1
    %p158 = scmp.ne.s32.totalorder %s153, %s155
    %p159 = scmp.eq.s32.totalorder %s14, 0
    %p160 = por %p158, %p159
    %p161 = scmp.ne.s32.totalorder %s153, %s155
    %p162 = scmp.eq.s32.totalorder %s19, 1
    %p163 = por %p161, %p162
    %p164 = scmp.ne.s32.totalorder %s155, %s156
    %p165 = scmp.eq.s32.totalorder %s19, 0
    %p166 = por %p164, %p165
    %p167 = scmp.ne.s32.totalorder %s155, %s156
    %p168 = scmp.eq.s32.totalorder %s20, 1
    %p169 = por %p167, %p168
    %p171 = scmp.ne.s32.totalorder %s156, %s170
    %p172 = scmp.eq.s32.totalorder %s20, 0
    %p173 = por %p171, %p172
    %s175 = sadd.s32 %s174, 1
    %p178 = scmp.eq.s32.totalorder %s14, 1
    %p179 = scmp.ne.s32.totalorder %s174, %s176
    %p180 = scmp.eq.s32.totalorder %s14, 0
    %p181 = por %p179, %p180
    %p182 = scmp.ne.s32.totalorder %s174, %s176
    %p183 = scmp.eq.s32.totalorder %s19, 1
    %p184 = por %p182, %p183
    %p185 = scmp.ne.s32.totalorder %s176, %s177
    %p186 = scmp.eq.s32.totalorder %s19, 0
    %p187 = por %p185, %p186
    %p188 = scmp.ne.s32.totalorder %s176, %s177
    %p189 = scmp.eq.s32.totalorder %s20, 1
    %p190 = por %p188, %p189
    %p192 = scmp.ne.s32.totalorder %s177, %s191
    %p193 = scmp.eq.s32.totalorder %s20, 0
    %p194 = por %p192, %p193
    %s195 = ssub.s32 %s14, %s21
    %p196 = scmp.eq.s32.totalorder %s195, 0
    %s198 = sadd.s32 %s197, 1
    %s199 = scalar_select %p196, %s197, %s198
    %p202 = pneg %p196
    %p203 = scmp.eq.s32.totalorder %s14, 1
    %p204 = por %p202, %p203
    %p205 = scmp.ne.s32.totalorder %s197, %s200
    %p206 = scmp.eq.s32.totalorder %s14, 0
    %p207 = por %p205, %p206
    %p208 = scmp.ne.s32.totalorder %s197, %s200
    %p209 = scmp.eq.s32.totalorder %s19, 1
    %p210 = por %p208, %p209
    %p211 = scmp.ne.s32.totalorder %s200, %s201
    %p212 = scmp.eq.s32.totalorder %s19, 0
    %p213 = por %p211, %p212
    %p214 = scmp.ne.s32.totalorder %s200, %s201
    %p215 = scmp.eq.s32.totalorder %s20, 1
    %p216 = por %p214, %p215
    %p218 = scmp.ne.s32.totalorder %s201, %s217
    %p219 = scmp.eq.s32.totalorder %s20, 0
    %p220 = por %p218, %p219
    %p221 = scmp.le.s32.totalorder 1, %s14
    %p222 = scmp.lt.s32.totalorder %s14, 3
    %p223 = pnand %p221, %p222
    %p224 = pneg %p223
    // Predicated region
    $region9: #{decoder_forward.1} parent=5 // pred_check
      _
    $region10: #{decoder_forward.1} parent=5 // pred_check_branch
      %226 = sbr.rel (%p223) target = $region12
    $region11: #{decoder_forward.1} parent=5 // pred_region
      %s227 = ssub.s32 %s14, 1
      // Predicated region
      $region13: #{decoder_forward.1} parent=11 // pred_check
        %p228 = pneg %p61
      $region14: #{decoder_forward.1} parent=11 // pred_check_branch
        %230 = sbr.rel (%p228) target = $region16
      $region15: #{decoder_forward.1} parent=11 // pred_region
        _
      $region16: #{decoder_forward.1} parent=11 // pred_fallthru
        _
      // Predicated region
      $region17: #{decoder_forward.1} parent=11 // pred_check
        %p231 = pneg %p82
      $region18: #{decoder_forward.1} parent=11 // pred_check_branch
        %233 = sbr.rel (%p231) target = $region20
      $region19: #{decoder_forward.1} parent=11 // pred_region
        _
      $region20: #{decoder_forward.1} parent=11 // pred_fallthru
        _
      // Predicated region
      $region21: #{decoder_forward.1} parent=11 // pred_check
        %p234 = pneg %p103
      $region22: #{decoder_forward.1} parent=11 // pred_check_branch
        %236 = sbr.rel (%p234) target = $region24
      $region23: #{decoder_forward.1} parent=11 // pred_region
        _
      $region24: #{decoder_forward.1} parent=11 // pred_fallthru
        _
      // Predicated region
      $region25: #{decoder_forward.1} parent=11 // pred_check
        %p237 = pneg %p124
      $region26: #{decoder_forward.1} parent=11 // pred_check_branch
        %239 = sbr.rel (%p237) target = $region28
      $region27: #{decoder_forward.1} parent=11 // pred_region
        _
      $region28: #{decoder_forward.1} parent=11 // pred_fallthru
        _
      // Predicated region
      $region29: #{decoder_forward.1} parent=11 // pred_check
        %p240 = pneg %p145
      $region30: #{decoder_forward.1} parent=11 // pred_check_branch
        %242 = sbr.rel (%p240) target = $region32
      $region31: #{decoder_forward.1} parent=11 // pred_region
        _
      $region32: #{decoder_forward.1} parent=11 // pred_fallthru
        _
      // Predicated region
      $region33: #{decoder_forward.1} parent=11 // pred_check
        %p243 = pneg %p166
      $region34: #{decoder_forward.1} parent=11 // pred_check_branch
        %245 = sbr.rel (%p243) target = $region36
      $region35: #{decoder_forward.1} parent=11 // pred_region
        _
      $region36: #{decoder_forward.1} parent=11 // pred_fallthru
        _
      // Predicated region
      $region37: #{decoder_forward.1} parent=11 // pred_check
        %p246 = pneg %p187
      $region38: #{decoder_forward.1} parent=11 // pred_check_branch
        %248 = sbr.rel (%p246) target = $region40
      $region39: #{decoder_forward.1} parent=11 // pred_region
        _
      $region40: #{decoder_forward.1} parent=11 // pred_fallthru
        _
    $region12: #{decoder_forward.1} parent=5 // pred_fallthru
      _
    %p249 = scmp.lt.s32.totalorder %s14, 2
    // Predicated region
    $region41: #{decoder_forward.1} parent=5 // pred_check
      %p250 = pneg %p249
    $region42: #{decoder_forward.1} parent=5 // pred_check_branch
      %252 = sbr.rel (%p250) target = $region44
    $region43: #{decoder_forward.1} parent=5 // pred_region
      // Predicated region
      $region45: #{decoder_forward.1} parent=43 // pred_check
        %p253 = pneg %p34
      $region46: #{decoder_forward.1} parent=43 // pred_check_branch
        %255 = sbr.rel (%p253) target = $region48
      $region47: #{decoder_forward.1} parent=43 // pred_region
        %p256 = scmp.lt.s32.totalorder %s14, 1
        %s257 = scalar_select %p256, %s14, 1
        %s258 = smul.addr %s257, 2
        %s259 = smul.addr %s258, 8
        %s260 = scalar_lea.vmem %s0, %s259
      $region48: #{decoder_forward.1} parent=43 // pred_fallthru
        _
    $region44: #{decoder_forward.1} parent=5 // pred_fallthru
      _
    %p261 = scmp.le.s32.totalorder 1, %s14
    %p262 = scmp.lt.s32.totalorder %s14, 3
    %p263 = pnand %p261, %p262
    %p264 = pneg %p263
    // Predicated region
    $region49: #{decoder_forward.1} parent=5 // pred_check
      _
    $region50: #{decoder_forward.1} parent=5 // pred_check_branch
      %266 = sbr.rel (%p263) target = $region52
    $region51: #{decoder_forward.1} parent=5 // pred_region
      %s267 = ssub.s32 %s14, 1
      %p268 = scmp.lt.s32.totalorder %s19, 1
      %s269 = scalar_select %p268, %s19, 1
      %s270 = smul.addr %s269, 2
      %s271 = smul.addr %s270, 8
      %s272 = scalar_lea.vmem %s0, %s271
      %p273 = pneg %p40
      %p274 = pneg %p37
      %p275 = pneg %p61
      %p276 = pneg %p58
      %p277 = pneg %p82
      %p278 = pneg %p79
      %p279 = pneg %p103
      %p280 = pneg %p100
      %p281 = pneg %p124
      %p282 = pneg %p121
      %p283 = pneg %p145
      %p284 = pneg %p142
      %p285 = pneg %p166
      %p286 = pneg %p163
      %p287 = pneg %p187
      %p288 = pneg %p184
      %p289 = pneg %p213
      %p290 = pneg %p210
      %p291 = scmp.lt.s32.totalorder %s19, 1
      %s292 = scalar_select %p291, %s19, 1
      %s293 = smul.addr %s292, 2
      %s294 = smul.addr %s293, 8
      %s295 = scalar_lea.vmem %s8, %s294
      %p296 = scmp.lt.s32.totalorder %s19, 1
      %s297 = scalar_select %p296, %s19, 1
      %s298 = smul.addr %s297, 2
      %s299 = smul.addr %s298, 8
      %s300 = scalar_lea.vmem %s0, %s299
      %p301 = scmp.lt.s32.totalorder %s19, 1
      %s302 = scalar_select %p301, %s19, 1
      %s303 = smul.addr %s302, 2
      %s304 = smul.addr %s303, 8
      %s305 = scalar_lea.vmem %s8, %s304
      %v307 = vld [vmem:[%s7] sm:$0xf]
      %v308 = vld [vmem:[%s300] sm:$0xff]
      %v309 = vld [vmem:[%s300 + $0x8] sm:$0xff]
      %v310 = vpack.c.bf16 %v308, %v308
      %v311 = vpack.c.bf16 %v309, %v309
      %314 = vrot.lane.b32.xlu0 %v310, 17
      %v315 = vpop.permute.xlu0 %314
      %316 = vrot.lane.b32.xlu0 %v311, 17
      %v317 = vpop.permute.xlu0 %316
      %vm318 = vcmask 138240
      %v319 = vsel %vm318, %v315, %v317
      %vm320 = vcmask 138240
      %v323 = vsel %vm320, 0, %v315
      %v325 = vsel %vm320, %v317, 0
      %v326 = vld [vmem:[%s1] sm:$0x3]
      %s327 = scalar_lea.vmem %s1, 6
      %v328 = vld [vmem:[%s327] sm:$0x3]
      %331 = vrot.lane.b32.xlu0 %v323, 112
      %v332 = vpop.permute.xlu0 %331
      %333 = vrot.lane.b32.xlu0 %v319, 112
      %v334 = vpop.permute.xlu0 %333
      %335 = vrot.lane.b32.xlu0 %v325, 112
      %v336 = vpop.permute.xlu0 %335
      %vm337 = vcmask 916480
      %v338 = vsel %vm337, %v332, %v334
      %v339 = vsel %vm337, %v334, %v336
      %vm340 = vcmask 64512
      %v342 = vsel %vm340, %v328, 0
      %vm344 = vcmask 1043456
      %v346 = vsel %vm344, %v338, 0
      %v349 = vsel %vm344, %v339, 0
      %351 = vmatprep.subr.bf16.mxu0 %v349
      %352 = vmatpush1.bf16.msra.mxu0 %v346
      %353 = vmatprep.subr.bf16.mxu0 0
      %354 = vmatpush1.bf16.msra.mxu0 0
      %355 = vmatprep.subr.bf16.mxu0 0
      %356 = vmatpush1.bf16.msra.mxu0 0
      %357 = vmatprep.subr.bf16.mxu0 0
      %358 = vmatpush1.bf16.msra.mxu0 0
      %359 = vmatprep.subr.bf16.mxu0 0
      %360 = vmatpush1.bf16.msra.mxu0 0
      %361 = vmatprep.subr.bf16.mxu0 0
      %362 = vmatpush1.bf16.msra.mxu0 0
      %363 = vmatprep.subr.bf16.mxu0 0
      %364 = vmatpush1.bf16.msra.mxu0 0
      %365 = vmatprep.subr.bf16.mxu0 0
      %366 = vmatpush1.bf16.msra.mxu0 0
      %367 = vmatprep.subr.bf16.mxu0 0
      %368 = vmatpush1.bf16.msra.mxu0 0
      %369 = vmatprep.subr.bf16.mxu0 0
      %370 = vmatpush1.bf16.msra.mxu0 0
      %371 = vmatprep.subr.bf16.mxu0 0
      %372 = vmatpush1.bf16.msra.mxu0 0
      %373 = vmatprep.subr.bf16.mxu0 0
      %374 = vmatpush1.bf16.msra.mxu0 0
      %375 = vmatprep.subr.bf16.mxu0 0
      %376 = vmatpush1.bf16.msra.mxu0 0
      %377 = vmatprep.subr.bf16.mxu0 0
      %378 = vmatpush1.bf16.msra.mxu0 0
      %379 = vmatprep.subr.bf16.mxu0 0
      %380 = vmatpush1.bf16.msra.mxu0 0
      %381 = vmatprep.subr.bf16.mxu0 0
      %382 = vmatpush1.bf16.msra.mxu0 0
      %383 = vmatprep.mubr.bf16.mxu0 0
      %384 = vmatmul.mubr.bf16.gmra.mrb[0].mxu0 %v342
      %v385 = vpop.f32.mrb[0].mxu0
      %v386 = vadd.f32 0.0, %v385
      %v387 = vpop.f32.mrb[0].mxu0
      %v388 = vadd.f32 0.0, %v387
      %v389 = vpop.f32.mrb[0].mxu0
      %v390 = vpop.f32.mrb[0].mxu0
      %391 = vdwg.mxu0
      %v393 = vsel %vm340, %v326, 0
      %v395 = vsel %vm344, %v323, 0
      %v398 = vsel %vm344, %v319, 0
      %400 = vmatprep.subr.bf16.mxu0 %v398
      %401 = vmatpush1.bf16.msra.mxu0 %v395
      %402 = vmatprep.subr.bf16.mxu0 0
      %403 = vmatpush1.bf16.msra.mxu0 0
      %404 = vmatprep.subr.bf16.mxu0 0
      %405 = vmatpush1.bf16.msra.mxu0 0
      %406 = vmatprep.subr.bf16.mxu0 0
      %407 = vmatpush1.bf16.msra.mxu0 0
      %408 = vmatprep.subr.bf16.mxu0 0
      %409 = vmatpush1.bf16.msra.mxu0 0
      %410 = vmatprep.subr.bf16.mxu0 0
      %411 = vmatpush1.bf16.msra.mxu0 0
      %412 = vmatprep.subr.bf16.mxu0 0
      %413 = vmatpush1.bf16.msra.mxu0 0
      %414 = vmatprep.subr.bf16.mxu0 0
      %415 = vmatpush1.bf16.msra.mxu0 0
      %416 = vmatprep.subr.bf16.mxu0 0
      %417 = vmatpush1.bf16.msra.mxu0 0
      %418 = vmatprep.subr.bf16.mxu0 0
      %419 = vmatpush1.bf16.msra.mxu0 0
      %420 = vmatprep.subr.bf16.mxu0 0
      %421 = vmatpush1.bf16.msra.mxu0 0
      %422 = vmatprep.subr.bf16.mxu0 0
      %423 = vmatpush1.bf16.msra.mxu0 0
      %424 = vmatprep.subr.bf16.mxu0 0
      %425 = vmatpush1.bf16.msra.mxu0 0
      %426 = vmatprep.subr.bf16.mxu0 0
      %427 = vmatpush1.bf16.msra.mxu0 0
      %428 = vmatprep.subr.bf16.mxu0 0
      %429 = vmatpush1.bf16.msra.mxu0 0
      %430 = vmatprep.subr.bf16.mxu0 0
      %431 = vmatpush1.bf16.msra.mxu0 0
      %432 = vmatprep.mubr.bf16.mxu0 0
      %433 = vmatmul.mubr.bf16.gmra.mrb[0].mxu0 %v393
      %v434 = vpop.f32.mrb[0].mxu0
      %v435 = vadd.f32 %v386, %v434
      %v436 = vpop.f32.mrb[0].mxu0
      %v437 = vadd.f32 %v388, %v436
      %v438 = vpop.f32.mrb[0].mxu0
      %v439 = vpop.f32.mrb[0].mxu0
      %440 = vdwg.mxu0
      %s441 = scalar_lea.vmem %s1, 12
      %v442 = vld [vmem:[%s441] sm:$0x3]
      %443 = vrot.lane.b32.xlu0 %v323, 96
      %v444 = vpop.permute.xlu0 %443
      %445 = vrot.lane.b32.xlu0 %v319, 96
      %v446 = vpop.permute.xlu0 %445
      %447 = vrot.lane.b32.xlu0 %v325, 96
      %v448 = vpop.permute.xlu0 %447
      %vm449 = vcmask 785408
      %v450 = vsel %vm449, %v444, %v446
      %v451 = vsel %vm449, %v446, %v448
      %v453 = vsel %vm340, %v442, 0
      %v456 = vsel %vm344, %v450, 0
      %v459 = vsel %vm344, %v451, 0
      %461 = vmatprep.subr.bf16.mxu0 %v459
      %462 = vmatpush1.bf16.msra.mxu0 %v456
      %463 = vmatprep.subr.bf16.mxu0 0
      %464 = vmatpush1.bf16.msra.mxu0 0
      %465 = vmatprep.subr.bf16.mxu0 0
      %466 = vmatpush1.bf16.msra.mxu0 0
      %467 = vmatprep.subr.bf16.mxu0 0
      %468 = vmatpush1.bf16.msra.mxu0 0
      %469 = vmatprep.subr.bf16.mxu0 0
      %470 = vmatpush1.bf16.msra.mxu0 0
      %471 = vmatprep.subr.bf16.mxu0 0
      %472 = vmatpush1.bf16.msra.mxu0 0
      %473 = vmatprep.subr.bf16.mxu0 0
      %474 = vmatpush1.bf16.msra.mxu0 0
      %475 = vmatprep.subr.bf16.mxu0 0
      %476 = vmatpush1.bf16.msra.mxu0 0
      %477 = vmatprep.subr.bf16.mxu0 0
      %478 = vmatpush1.bf16.msra.mxu0 0
      %479 = vmatprep.subr.bf16.mxu0 0
      %480 = vmatpush1.bf16.msra.mxu0 0
      %481 = vmatprep.subr.bf16.mxu0 0
      %482 = vmatpush1.bf16.msra.mxu0 0
      %483 = vmatprep.subr.bf16.mxu0 0
      %484 = vmatpush1.bf16.msra.mxu0 0
      %485 = vmatprep.subr.bf16.mxu0 0
      %486 = vmatpush1.bf16.msra.mxu0 0
      %487 = vmatprep.subr.bf16.mxu0 0
      %488 = vmatpush1.bf16.msra.mxu0 0
      %489 = vmatprep.subr.bf16.mxu0 0
      %490 = vmatpush1.bf16.msra.mxu0 0
      %491 = vmatprep.subr.bf16.mxu0 0
      %492 = vmatpush1.bf16.msra.mxu0 0
      %493 = vmatprep.mubr.bf16.mxu0 0
      %494 = vmatmul.mubr.bf16.gmra.mrb[0].mxu0 %v453
      %v495 = vpop.f32.mrb[0].mxu0
      %v496 = vadd.f32 0.0, %v495
      %v497 = vpop.f32.mrb[0].mxu0
      %v498 = vadd.f32 0.0, %v497
      %v499 = vpop.f32.mrb[0].mxu0
      %v500 = vpop.f32.mrb[0].mxu0
      %501 = vdwg.mxu0
      %v502 = vadd.f32 %v435, %v496
      %v503 = vadd.f32 %v437, %v498
      %s504 = scalar_lea.vmem %s1, 2
      %v505 = vld [vmem:[%s504] sm:$0x3]
      %s506 = scalar_lea.vmem %s1, 8
      %v507 = vld [vmem:[%s506] sm:$0x3]
      %508 = vrot.lane.b32.xlu0 %v323, 111
      %v509 = vpop.permute.xlu0 %508
      %510 = vrot.lane.b32.xlu0 %v319, 111
      %v511 = vpop.permute.xlu0 %510
      %512 = vrot.lane.b32.xlu0 %v325, 111
      %v513 = vpop.permute.xlu0 %512
      %vm514 = vcmask 908288
      %v515 = vsel %vm514, %v509, %v511
      %v516 = vsel %vm514, %v511, %v513
      %v518 = vsel %vm340, %v507, 0
      %v521 = vsel %vm344, %v515, 0
      %v524 = vsel %vm344, %v516, 0
      %526 = vmatprep.subr.bf16.mxu0 %v524
      %527 = vmatpush1.bf16.msra.mxu0 %v521
      %528 = vmatprep.subr.bf16.mxu0 0
      %529 = vmatpush1.bf16.msra.mxu0 0
      %530 = vmatprep.subr.bf16.mxu0 0
      %531 = vmatpush1.bf16.msra.mxu0 0
      %532 = vmatprep.subr.bf16.mxu0 0
      %533 = vmatpush1.bf16.msra.mxu0 0
      %534 = vmatprep.subr.bf16.mxu0 0
      %535 = vmatpush1.bf16.msra.mxu0 0
      %536 = vmatprep.subr.bf16.mxu0 0
      %537 = vmatpush1.bf16.msra.mxu0 0
      %538 = vmatprep.subr.bf16.mxu0 0
      %539 = vmatpush1.bf16.msra.mxu0 0
      %540 = vmatprep.subr.bf16.mxu0 0
      %541 = vmatpush1.bf16.msra.mxu0 0
      %542 = vmatprep.subr.bf16.mxu0 0
      %543 = vmatpush1.bf16.msra.mxu0 0
      %544 = vmatprep.subr.bf16.mxu0 0
      %545 = vmatpush1.bf16.msra.mxu0 0
      %546 = vmatprep.subr.bf16.mxu0 0
      %547 = vmatpush1.bf16.msra.mxu0 0
      %548 = vmatprep.subr.bf16.mxu0 0
      %549 = vmatpush1.bf16.msra.mxu0 0
      %550 = vmatprep.subr.bf16.mxu0 0
      %551 = vmatpush1.bf16.msra.mxu0 0
      %552 = vmatprep.subr.bf16.mxu0 0
      %553 = vmatpush1.bf16.msra.mxu0 0
      %554 = vmatprep.subr.bf16.mxu0 0
      %555 = vmatpush1.bf16.msra.mxu0 0
      %556 = vmatprep.subr.bf16.mxu0 0
      %557 = vmatpush1.bf16.msra.mxu0 0
      %558 = vmatprep.mubr.bf16.mxu0 0
      %559 = vmatmul.mubr.bf16.gmra.mrb[0].mxu0 %v518
      %v560 = vpop.f32.mrb[0].mxu0
      %v561 = vadd.f32 0.0, %v560
      %v562 = vpop.f32.mrb[0].mxu0
      %v563 = vadd.f32 0.0, %v562
      %v564 = vpop.f32.mrb[0].mxu0
      %v565 = vpop.f32.mrb[0].mxu0
      %566 = vdwg.mxu0
      %567 = vrot.lane.b32.xlu0 %v323, 127
      %v568 = vpop.permute.xlu0 %567
      %569 = vrot.lane.b32.xlu0 %v319, 127
      %v570 = vpop.permute.xlu0 %569
      %571 = vrot.lane.b32.xlu0 %v325, 127
      %v572 = vpop.permute.xlu0 %571
      %vm573 = vcmask 1039360
      %v574 = vsel %vm573, %v568, %v570
      %v575 = vsel %vm573, %v570, %v572
      %v577 = vsel %vm340, %v505, 0
      %v580 = vsel %vm344, %v574, 0
      %v583 = vsel %vm344, %v575, 0
      %585 = vmatprep.subr.bf16.mxu0 %v583
      %586 = vmatpush1.bf16.msra.mxu0 %v580
      %587 = vmatprep.subr.bf16.mxu0 0
      %588 = vmatpush1.bf16.msra.mxu0 0
      %589 = vmatprep.subr.bf16.mxu0 0
      %590 = vmatpush1.bf16.msra.mxu0 0
      %591 = vmatprep.subr.bf16.mxu0 0
      %592 = vmatpush1.bf16.msra.mxu0 0
      %593 = vmatprep.subr.bf16.mxu0 0
      %594 = vmatpush1.bf16.msra.mxu0 0
      %595 = vmatprep.subr.bf16.mxu0 0
      %596 = vmatpush1.bf16.msra.mxu0 0
      %597 = vmatprep.subr.bf16.mxu0 0
      %598 = vmatpush1.bf16.msra.mxu0 0
      %599 = vmatprep.subr.bf16.mxu0 0
      %600 = vmatpush1.bf16.msra.mxu0 0
      %601 = vmatprep.subr.bf16.mxu0 0
      %602 = vmatpush1.bf16.msra.mxu0 0
      %603 = vmatprep.subr.bf16.mxu0 0
      %604 = vmatpush1.bf16.msra.mxu0 0
      %605 = vmatprep.subr.bf16.mxu0 0
      %606 = vmatpush1.bf16.msra.mxu0 0
      %607 = vmatprep.subr.bf16.mxu0 0
      %608 = vmatpush1.bf16.msra.mxu0 0
      %609 = vmatprep.subr.bf16.mxu0 0
      %610 = vmatpush1.bf16.msra.mxu0 0
      %611 = vmatprep.subr.bf16.mxu0 0
      %612 = vmatpush1.bf16.msra.mxu0 0
      %613 = vmatprep.subr.bf16.mxu0 0
      %614 = vmatpush1.bf16.msra.mxu0 0
      %615 = vmatprep.subr.bf16.mxu0 0
      %616 = vmatpush1.bf16.msra.mxu0 0
      %617 = vmatprep.mubr.bf16.mxu0 0
      %618 = vmatmul.mubr.bf16.gmra.mrb[0].mxu0 %v577
      %v619 = vpop.f32.mrb[0].mxu0
      %v620 = vadd.f32 %v561, %v619
      %v621 = vpop.f32.mrb[0].mxu0
      %v622 = vadd.f32 %v563, %v621
      %v623 = vpop.f32.mrb[0].mxu0
      %v624 = vpop.f32.mrb[0].mxu0
      %625 = vdwg.mxu0
      %s626 = scalar_lea.vmem %s1, 14
      %v627 = vld [vmem:[%s626] sm:$0x3]
      %628 = vrot.lane.b32.xlu0 %v323, 95
      %v629 = vpop.permute.xlu0 %628
      %630 = vrot.lane.b32.xlu0 %v319, 95
      %v631 = vpop.permute.xlu0 %630
      %632 = vrot.lane.b32.xlu0 %v325, 95
      %v633 = vpop.permute.xlu0 %632
      %vm634 = vcmask 777216
      %v635 = vsel %vm634, %v629, %v631
      %v636 = vsel %vm634, %v631, %v633
      %v638 = vsel %vm340, %v627, 0
      %v641 = vsel %vm344, %v635, 0
      %v644 = vsel %vm344, %v636, 0
      %646 = vmatprep.subr.bf16.mxu0 %v644
      %647 = vmatpush1.bf16.msra.mxu0 %v641
      %648 = vmatprep.subr.bf16.mxu0 0
      %649 = vmatpush1.bf16.msra.mxu0 0
      %650 = vmatprep.subr.bf16.mxu0 0
      %651 = vmatpush1.bf16.msra.mxu0 0
      %652 = vmatprep.subr.bf16.mxu0 0
      %653 = vmatpush1.bf16.msra.mxu0 0
      %654 = vmatprep.subr.bf16.mxu0 0
      %655 = vmatpush1.bf16.msra.mxu0 0
      %656 = vmatprep.subr.bf16.mxu0 0
      %657 = vmatpush1.bf16.msra.mxu0 0
      %658 = vmatprep.subr.bf16.mxu0 0
      %659 = vmatpush1.bf16.msra.mxu0 0
      %660 = vmatprep.subr.bf16.mxu0 0
      %661 = vmatpush1.bf16.msra.mxu0 0
      %662 = vmatprep.subr.bf16.mxu0 0
      %663 = vmatpush1.bf16.msra.mxu0 0
      %664 = vmatprep.subr.bf16.mxu0 0
      %665 = vmatpush1.bf16.msra.mxu0 0
      %666 = vmatprep.subr.bf16.mxu0 0
      %667 = vmatpush1.bf16.msra.mxu0 0
      %668 = vmatprep.subr.bf16.mxu0 0
      %669 = vmatpush1.bf16.msra.mxu0 0
      %670 = vmatprep.subr.bf16.mxu0 0
      %671 = vmatpush1.bf16.msra.mxu0 0
      %672 = vmatprep.subr.bf16.mxu0 0
      %673 = vmatpush1.bf16.msra.mxu0 0
      %674 = vmatprep.subr.bf16.mxu0 0
      %675 = vmatpush1.bf16.msra.mxu0 0
      %676 = vmatprep.subr.bf16.mxu0 0
      %677 = vmatpush1.bf16.msra.mxu0 0
      %678 = vmatprep.mubr.bf16.mxu0 0
      %679 = vmatmul.mubr.bf16.gmra.mrb[0].mxu0 %v638
      %v680 = vpop.f32.mrb[0].mxu0
      %v681 = vadd.f32 0.0, %v680
      %v682 = vpop.f32.mrb[0].mxu0
      %v683 = vadd.f32 0.0, %v682
      %v684 = vpop.f32.mrb[0].mxu0
      %v685 = vpop.f32.mrb[0].mxu0
      %686 = vdwg.mxu0
      %v687 = vadd.f32 %v620, %v681
      %v688 = vadd.f32 %v622, %v683
      %s689 = scalar_lea.vmem %s1, 4
      %v690 = vld [vmem:[%s689] sm:$0x3]
      %s691 = scalar_lea.vmem %s1, 10
      %v692 = vld [vmem:[%s691] sm:$0x3]
      %693 = vrot.lane.b32.xlu0 %v323, 110
      %v694 = vpop.permute.xlu0 %693
      %695 = vrot.lane.b32.xlu0 %v319, 110
      %v696 = vpop.permute.xlu0 %695
      %697 = vrot.lane.b32.xlu0 %v325, 110
      %v698 = vpop.permute.xlu0 %697
      %vm699 = vcmask 900096
      %v700 = vsel %vm699, %v694, %v696
      %v701 = vsel %vm699, %v696, %v698
      %v703 = vsel %vm340, %v692, 0
      %v706 = vsel %vm344, %v700, 0
      %v709 = vsel %vm344, %v701, 0
      %711 = vmatprep.subr.bf16.mxu0 %v709
      %712 = vmatpush1.bf16.msra.mxu0 %v706
      %713 = vmatprep.subr.bf16.mxu0 0
      %714 = vmatpush1.bf16.msra.mxu0 0
      %715 = vmatprep.subr.bf16.mxu0 0
      %716 = vmatpush1.bf16.msra.mxu0 0
      %717 = vmatprep.subr.bf16.mxu0 0
      %718 = vmatpush1.bf16.msra.mxu0 0
      %719 = vmatprep.subr.bf16.mxu0 0
      %720 = vmatpush1.bf16.msra.mxu0 0
      %721 = vmatprep.subr.bf16.mxu0 0
      %722 = vmatpush1.bf16.msra.mxu0 0
      %723 = vmatprep.subr.bf16.mxu0 0
      %724 = vmatpush1.bf16.msra.mxu0 0
      %725 = vmatprep.subr.bf16.mxu0 0
      %726 = vmatpush1.bf16.msra.mxu0 0
      %727 = vmatprep.subr.bf16.mxu0 0
      %728 = vmatpush1.bf16.msra.mxu0 0
      %729 = vmatprep.subr.bf16.mxu0 0
      %730 = vmatpush1.bf16.msra.mxu0 0
      %731 = vmatprep.subr.bf16.mxu0 0
      %732 = vmatpush1.bf16.msra.mxu0 0
      %733 = vmatprep.subr.bf16.mxu0 0
      %734 = vmatpush1.bf16.msra.mxu0 0
      %735 = vmatprep.subr.bf16.mxu0 0
      %736 = vmatpush1.bf16.msra.mxu0 0
      %737 = vmatprep.subr.bf16.mxu0 0
      %738 = vmatpush1.bf16.msra.mxu0 0
      %739 = vmatprep.subr.bf16.mxu0 0
      %740 = vmatpush1.bf16.msra.mxu0 0
      %741 = vmatprep.subr.bf16.mxu0 0
      %742 = vmatpush1.bf16.msra.mxu0 0
      %743 = vmatprep.mubr.bf16.mxu0 0
      %744 = vmatmul.mubr.bf16.gmra.mrb[0].mxu0 %v703
      %v745 = vpop.f32.mrb[0].mxu0
      %v746 = vadd.f32 0.0, %v745
      %v747 = vpop.f32.mrb[0].mxu0
      %v748 = vadd.f32 0.0, %v747
      %v749 = vpop.f32.mrb[0].mxu0
      %v750 = vpop.f32.mrb[0].mxu0
      %751 = vdwg.mxu0
      %752 = vrot.lane.b32.xlu0 %v323, 126
      %v753 = vpop.permute.xlu0 %752
      %754 = vrot.lane.b32.xlu0 %v319, 126
      %v755 = vpop.permute.xlu0 %754
      %756 = vrot.lane.b32.xlu0 %v325, 126
      %v757 = vpop.permute.xlu0 %756
      %vm758 = vcmask 1031168
      %v759 = vsel %vm758, %v753, %v755
      %v760 = vsel %vm758, %v755, %v757
      %v762 = vsel %vm340, %v690, 0
      %v765 = vsel %vm344, %v759, 0
      %v768 = vsel %vm344, %v760, 0
      %770 = vmatprep.subr.bf16.mxu0 %v768
      %771 = vmatpush1.bf16.msra.mxu0 %v765
      %772 = vmatprep.subr.bf16.mxu0 0
      %773 = vmatpush1.bf16.msra.mxu0 0
      %774 = vmatprep.subr.bf16.mxu0 0
      %775 = vmatpush1.bf16.msra.mxu0 0
      %776 = vmatprep.subr.bf16.mxu0 0
      %777 = vmatpush1.bf16.msra.mxu0 0
      %778 = vmatprep.subr.bf16.mxu0 0
      %779 = vmatpush1.bf16.msra.mxu0 0
      %780 = vmatprep.subr.bf16.mxu0 0
      %781 = vmatpush1.bf16.msra.mxu0 0
      %782 = vmatprep.subr.bf16.mxu0 0
      %783 = vmatpush1.bf16.msra.mxu0 0
      %784 = vmatprep.subr.bf16.mxu0 0
      %785 = vmatpush1.bf16.msra.mxu0 0
      %786 = vmatprep.subr.bf16.mxu0 0
      %787 = vmatpush1.bf16.msra.mxu0 0
      %788 = vmatprep.subr.bf16.mxu0 0
      %789 = vmatpush1.bf16.msra.mxu0 0
      %790 = vmatprep.subr.bf16.mxu0 0
      %791 = vmatpush1.bf16.msra.mxu0 0
      %792 = vmatprep.subr.bf16.mxu0 0
      %793 = vmatpush1.bf16.msra.mxu0 0
      %794 = vmatprep.subr.bf16.mxu0 0
      %795 = vmatpush1.bf16.msra.mxu0 0
      %796 = vmatprep.subr.bf16.mxu0 0
      %797 = vmatpush1.bf16.msra.mxu0 0
      %798 = vmatprep.subr.bf16.mxu0 0
      %799 = vmatpush1.bf16.msra.mxu0 0
      %800 = vmatprep.subr.bf16.mxu0 0
      %801 = vmatpush1.bf16.msra.mxu0 0
      %802 = vmatprep.mubr.bf16.mxu0 0
      %803 = vmatmul.mubr.bf16.gmra.mrb[0].mxu0 %v762
      %v804 = vpop.f32.mrb[0].mxu0
      %v805 = vadd.f32 %v746, %v804
      %v806 = vpop.f32.mrb[0].mxu0
      %v807 = vadd.f32 %v748, %v806
      %v808 = vpop.f32.mrb[0].mxu0
      %v809 = vpop.f32.mrb[0].mxu0
      %810 = vdwg.mxu0
      %s811 = scalar_lea.vmem %s1, 16
      %v812 = vld [vmem:[%s811] sm:$0x3]
      %813 = vrot.lane.b32.xlu0 %v323, 94
      %v814 = vpop.permute.xlu0 %813
      %815 = vrot.lane.b32.xlu0 %v319, 94
      %v816 = vpop.permute.xlu0 %815
      %817 = vrot.lane.b32.xlu0 %v325, 94
      %v818 = vpop.permute.xlu0 %817
      %vm819 = vcmask 769024
      %v820 = vsel %vm819, %v814, %v816
      %v821 = vsel %vm819, %v816, %v818
      %v823 = vsel %vm340, %v812, 0
      %v826 = vsel %vm344, %v820, 0
      %v829 = vsel %vm344, %v821, 0
      %831 = vmatprep.subr.bf16.mxu0 %v829
      %832 = vmatpush1.bf16.msra.mxu0 %v826
      %833 = vmatprep.subr.bf16.mxu0 0
      %834 = vmatpush1.bf16.msra.mxu0 0
      %835 = vmatprep.subr.bf16.mxu0 0
      %836 = vmatpush1.bf16.msra.mxu0 0
      %837 = vmatprep.subr.bf16.mxu0 0
      %838 = vmatpush1.bf16.msra.mxu0 0
      %839 = vmatprep.subr.bf16.mxu0 0
      %840 = vmatpush1.bf16.msra.mxu0 0
      %841 = vmatprep.subr.bf16.mxu0 0
      %842 = vmatpush1.bf16.msra.mxu0 0
      %843 = vmatprep.subr.bf16.mxu0 0
      %844 = vmatpush1.bf16.msra.mxu0 0
      %845 = vmatprep.subr.bf16.mxu0 0
      %846 = vmatpush1.bf16.msra.mxu0 0
      %847 = vmatprep.subr.bf16.mxu0 0
      %848 = vmatpush1.bf16.msra.mxu0 0
      %849 = vmatprep.subr.bf16.mxu0 0
      %850 = vmatpush1.bf16.msra.mxu0 0
      %851 = vmatprep.subr.bf16.mxu0 0
      %852 = vmatpush1.bf16.msra.mxu0 0
      %853 = vmatprep.subr.bf16.mxu0 0
      %854 = vmatpush1.bf16.msra.mxu0 0
      %855 = vmatprep.subr.bf16.mxu0 0
      %856 = vmatpush1.bf16.msra.mxu0 0
      %857 = vmatprep.subr.bf16.mxu0 0
      %858 = vmatpush1.bf16.msra.mxu0 0
      %859 = vmatprep.subr.bf16.mxu0 0
      %860 = vmatpush1.bf16.msra.mxu0 0
      %861 = vmatprep.subr.bf16.mxu0 0
      %862 = vmatpush1.bf16.msra.mxu0 0
      %863 = vmatprep.mubr.bf16.mxu0 0
      %864 = vmatmul.mubr.bf16.gmra.mrb[0].mxu0 %v823
      %v865 = vpop.f32.mrb[0].mxu0
      %v866 = vadd.f32 0.0, %v865
      %v867 = vpop.f32.mrb[0].mxu0
      %v868 = vadd.f32 0.0, %v867
      %v869 = vpop.f32.mrb[0].mxu0
      %v870 = vpop.f32.mrb[0].mxu0
      %871 = vdwg.mxu0
      %v872 = vadd.f32 %v805, %v866
      %v873 = vadd.f32 %v807, %v868
      %v875 = vlaneseq
      %v876 = vshrl.u32 %v875, 7
      %v877 = vsub.s32 0, %v876
      %v878 = vrot.slane %v307, %v877
      %v879 = vlaneseq
      %v880 = vshrl.u32 %v879, 7
      %v881 = vsub.s32 2, %v880
      %v882 = vrot.slane %v307, %v881
      %v885 = vlaneseq
      %v886 = vshrl.u32 %v885, 7
      %v887 = vsub.s32 0, %v886
      %v888 = vrot.slane %v878, %v887
      %v889 = vlaneseq
      %v890 = vshrl.u32 %v889, 7
      %v891 = vsub.s32 0, %v890
      %v892 = vrot.slane %v882, %v891
      %v893 = vmul.f32 %v502, %v888
      %v894 = vmul.f32 %v503, %v892
      %v895 = vadd.f32 %v893, %v687
      %v896 = vadd.f32 %v894, %v688
      %v897 = vlaneseq
      %v898 = vshrl.u32 %v897, 7
      %v899 = vsub.s32 1, %v898
      %v900 = vrot.slane %v307, %v899
      %v901 = vlaneseq
      %v902 = vshrl.u32 %v901, 7
      %v903 = vsub.s32 3, %v902
      %v904 = vrot.slane %v307, %v903
      %v907 = vlaneseq
      %v908 = vshrl.u32 %v907, 7
      %v909 = vsub.s32 1, %v908
      %v910 = vrot.slane %v900, %v909
      %v911 = vlaneseq
      %v912 = vshrl.u32 %v911, 7
      %v913 = vsub.s32 1, %v912
      %v914 = vrot.slane %v904, %v913
      %v915 = vmul.f32 %v872, %v910
      %v916 = vmul.f32 %v873, %v914
      %v917 = vadd.f32 %v895, %v915
      %v918 = vadd.f32 %v896, %v916
      %v919 = vld [vmem:[%s2] sm:$0xf]
      %921 = vset.pattern.permute.xlu0 0
      %922 = vperm.xlu0 %921, %v919
      %v923 = vpop.permute.xlu0 %922
      %v925 = vadd.f32 %v917, %v923
      %v926 = vadd.f32 %v918, %v923
      %v927 = vmax.f32 %v925, 0.0
      %v928 = vmax.f32 %v926, 0.0
      %v929 = vpack.c.bf16 %v927, %v927
      %v930 = vpack.c.bf16 %v928, %v928
      %933 = vrot.lane.b32.xlu0 %v929, 17
      %v934 = vpop.permute.xlu0 %933
      %935 = vrot.lane.b32.xlu0 %v930, 17
      %v936 = vpop.permute.xlu0 %935
      %v937 = vsel %vm318, %v934, %v936
      %v939 = vsel %vm320, 0, %v934
      %v941 = vsel %vm320, %v936, 0
      %v942 = vld [vmem:[%s3] sm:$0x3]
      %s943 = scalar_lea.vmem %s3, 6
      %v944 = vld [vmem:[%s943] sm:$0x3]
      %947 = vrot.lane.b32.xlu0 %v939, 112
      %v948 = vpop.permute.xlu0 %947
      %949 = vrot.lane.b32.xlu0 %v937, 112
      %v950 = vpop.permute.xlu0 %949
      %951 = vrot.lane.b32.xlu0 %v941, 112
      %v952 = vpop.permute.xlu0 %951
      %v953 = vsel %vm337, %v948, %v950
      %v954 = vsel %vm337, %v950, %v952
      %vm955 = vcmask 31744
      %v957 = vsel %vm955, %v944, 0
      %vm959 = vcmask 1041408
      %v961 = vsel %vm959, %v953, 0
      %v964 = vsel %vm959, %v954, 0
      %966 = vmatprep.subr.bf16.mxu0 %v964
      %967 = vmatpush1.bf16.msra.mxu0 %v961
      %968 = vmatprep.subr.bf16.mxu0 0
      %969 = vmatpush1.bf16.msra.mxu0 0
      %970 = vmatprep.subr.bf16.mxu0 0
      %971 = vmatpush1.bf16.msra.mxu0 0
      %972 = vmatprep.subr.bf16.mxu0 0
      %973 = vmatpush1.bf16.msra.mxu0 0
      %974 = vmatprep.subr.bf16.mxu0 0
      %975 = vmatpush1.bf16.msra.mxu0 0
      %976 = vmatprep.subr.bf16.mxu0 0
      %977 = vmatpush1.bf16.msra.mxu0 0
      %978 = vmatprep.subr.bf16.mxu0 0
      %979 = vmatpush1.bf16.msra.mxu0 0
      %980 = vmatprep.subr.bf16.mxu0 0
      %981 = vmatpush1.bf16.msra.mxu0 0
      %982 = vmatprep.subr.bf16.mxu0 0
      %983 = vmatpush1.bf16.msra.mxu0 0
      %984 = vmatprep.subr.bf16.mxu0 0
      %985 = vmatpush1.bf16.msra.mxu0 0
      %986 = vmatprep.subr.bf16.mxu0 0
      %987 = vmatpush1.bf16.msra.mxu0 0
      %988 = vmatprep.subr.bf16.mxu0 0
      %989 = vmatpush1.bf16.msra.mxu0 0
      %990 = vmatprep.subr.bf16.mxu0 0
      %991 = vmatpush1.bf16.msra.mxu0 0
      %992 = vmatprep.subr.bf16.mxu0 0
      %993 = vmatpush1.bf16.msra.mxu0 0
      %994 = vmatprep.subr.bf16.mxu0 0
      %995 = vmatpush1.bf16.msra.mxu0 0
      %996 = vmatprep.subr.bf16.mxu0 0
      %997 = vmatpush1.bf16.msra.mxu0 0
      %998 = vmatprep.mubr.bf16.mxu0 0
      %999 = vmatmul.mubr.bf16.gmra.mrb[0].mxu0 %v957
      %v1000 = vpop.f32.mrb[0].mxu0
      %v1001 = vadd.f32 0.0, %v1000
      %v1002 = vpop.f32.mrb[0].mxu0
      %v1003 = vadd.f32 0.0, %v1002
      %v1004 = vpop.f32.mrb[0].mxu0
      %v1005 = vpop.f32.mrb[0].mxu0
      %1006 = vdwg.mxu0
      %v1008 = vsel %vm955, %v942, 0
      %v1010 = vsel %vm959, %v939, 0
      %v1013 = vsel %vm959, %v937, 0
      %1015 = vmatprep.subr.bf16.mxu0 %v1013
      %1016 = vmatpush1.bf16.msra.mxu0 %v1010
      %1017 = vmatprep.subr.bf16.mxu0 0
      %1018 = vmatpush1.bf16.msra.mxu0 0
      %1019 = vmatprep.subr.bf16.mxu0 0
      %1020 = vmatpush1.bf16.msra.mxu0 0
      %1021 = vmatprep.subr.bf16.mxu0 0
      %1022 = vmatpush1.bf16.msra.mxu0 0
      %1023 = vmatprep.subr.bf16.mxu0 0
      %1024 = vmatpush1.bf16.msra.mxu0 0
      %1025 = vmatprep.subr.bf16.mxu0 0
      %1026 = vmatpush1.bf16.msra.mxu0 0
      %1027 = vmatprep.subr.bf16.mxu0 0
      %1028 = vmatpush1.bf16.msra.mxu0 0
      %1029 = vmatprep.subr.bf16.mxu0 0
      %1030 = vmatpush1.bf16.msra.mxu0 0
      %1031 = vmatprep.subr.bf16.mxu0 0
      %1032 = vmatpush1.bf16.msra.mxu0 0
      %1033 = vmatprep.subr.bf16.mxu0 0
      %1034 = vmatpush1.bf16.msra.mxu0 0
      %1035 = vmatprep.subr.bf16.mxu0 0
      %1036 = vmatpush1.bf16.msra.mxu0 0
      %1037 = vmatprep.subr.bf16.mxu0 0
      %1038 = vmatpush1.bf16.msra.mxu0 0
      %1039 = vmatprep.subr.bf16.mxu0 0
      %1040 = vmatpush1.bf16.msra.mxu0 0
      %1041 = vmatprep.subr.bf16.mxu0 0
      %1042 = vmatpush1.bf16.msra.mxu0 0
      %1043 = vmatprep.subr.bf16.mxu0 0
      %1044 = vmatpush1.bf16.msra.mxu0 0
      %1045 = vmatprep.subr.bf16.mxu0 0
      %1046 = vmatpush1.bf16.msra.mxu0 0
      %1047 = vmatprep.mubr.bf16.mxu0 0
      %1048 = vmatmul.mubr.bf16.gmra.mrb[0].mxu0 %v1008
      %v1049 = vpop.f32.mrb[0].mxu0
      %v1050 = vadd.f32 %v1001, %v1049
      %v1051 = vpop.f32.mrb[0].mxu0
      %v1052 = vadd.f32 %v1003, %v1051
      %v1053 = vpop.f32.mrb[0].mxu0
      %v1054 = vpop.f32.mrb[0].mxu0
      %1055 = vdwg.mxu0
      %s1056 = scalar_lea.vmem %s3, 12
      %v1057 = vld [vmem:[%s1056] sm:$0x3]
      %1058 = vrot.lane.b32.xlu0 %v939, 96
      %v1059 = vpop.permute.xlu0 %1058
      %1060 = vrot.lane.b32.xlu0 %v937, 96
      %v1061 = vpop.permute.xlu0 %1060
      %1062 = vrot.lane.b32.xlu0 %v941, 96
      %v1063 = vpop.permute.xlu0 %1062
      %v1064 = vsel %vm449, %v1059, %v1061
      %v1065 = vsel %vm449, %v1061, %v1063
      %v1067 = vsel %vm955, %v1057, 0
      %v1070 = vsel %vm959, %v1064, 0
      %v1073 = vsel %vm959, %v1065, 0
      %1075 = vmatprep.subr.bf16.mxu0 %v1073
      %1076 = vmatpush1.bf16.msra.mxu0 %v1070
      %1077 = vmatprep.subr.bf16.mxu0 0
      %1078 = vmatpush1.bf16.msra.mxu0 0
      %1079 = vmatprep.subr.bf16.mxu0 0
      %1080 = vmatpush1.bf16.msra.mxu0 0
      %1081 = vmatprep.subr.bf16.mxu0 0
      %1082 = vmatpush1.bf16.msra.mxu0 0
      %1083 = vmatprep.subr.bf16.mxu0 0
      %1084 = vmatpush1.bf16.msra.mxu0 0
      %1085 = vmatprep.subr.bf16.mxu0 0
      %1086 = vmatpush1.bf16.msra.mxu0 0
      %1087 = vmatprep.subr.bf16.mxu0 0
      %1088 = vmatpush1.bf16.msra.mxu0 0
      %1089 = vmatprep.subr.bf16.mxu0 0
      %1090 = vmatpush1.bf16.msra.mxu0 0
      %1091 = vmatprep.subr.bf16.mxu0 0
      %1092 = vmatpush1.bf16.msra.mxu0 0
      %1093 = vmatprep.subr.bf16.mxu0 0
      %1094 = vmatpush1.bf16.msra.mxu0 0
      %1095 = vmatprep.subr.bf16.mxu0 0
      %1096 = vmatpush1.bf16.msra.mxu0 0
      %1097 = vmatprep.subr.bf16.mxu0 0
      %1098 = vmatpush1.bf16.msra.mxu0 0
      %1099 = vmatprep.subr.bf16.mxu0 0
      %1100 = vmatpush1.bf16.msra.mxu0 0
      %1101 = vmatprep.subr.bf16.mxu0 0
      %1102 = vmatpush1.bf16.msra.mxu0 0
      %1103 = vmatprep.subr.bf16.mxu0 0
      %1104 = vmatpush1.bf16.msra.mxu0 0
      %1105 = vmatprep.subr.bf16.mxu0 0
      %1106 = vmatpush1.bf16.msra.mxu0 0
      %1107 = vmatprep.mubr.bf16.mxu0 0
      %1108 = vmatmul.mubr.bf16.gmra.mrb[0].mxu0 %v1067
      %v1109 = vpop.f32.mrb[0].mxu0
      %v1110 = vadd.f32 0.0, %v1109
      %v1111 = vpop.f32.mrb[0].mxu0
      %v1112 = vadd.f32 0.0, %v1111
      %v1113 = vpop.f32.mrb[0].mxu0
      %v1114 = vpop.f32.mrb[0].mxu0
      %1115 = vdwg.mxu0
      %v1116 = vadd.f32 %v1050, %v1110
      %v1117 = vadd.f32 %v1052, %v1112
      %s1118 = scalar_lea.vmem %s3, 2
      %v1119 = vld [vmem:[%s1118] sm:$0x3]
      %s1120 = scalar_lea.vmem %s3, 8
      %v1121 = vld [vmem:[%s1120] sm:$0x3]
      %1122 = vrot.lane.b32.xlu0 %v939, 111
      %v1123 = vpop.permute.xlu0 %1122
      %1124 = vrot.lane.b32.xlu0 %v937, 111
      %v1125 = vpop.permute.xlu0 %1124
      %1126 = vrot.lane.b32.xlu0 %v941, 111
      %v1127 = vpop.permute.xlu0 %1126
      %v1128 = vsel %vm514, %v1123, %v1125
      %v1129 = vsel %vm514, %v1125, %v1127
      %v1131 = vsel %vm955, %v1121, 0
      %v1134 = vsel %vm959, %v1128, 0
      %v1137 = vsel %vm959, %v1129, 0
      %1139 = vmatprep.subr.bf16.mxu0 %v1137
      %1140 = vmatpush1.bf16.msra.mxu0 %v1134
      %1141 = vmatprep.subr.bf16.mxu0 0
      %1142 = vmatpush1.bf16.msra.mxu0 0
      %1143 = vmatprep.subr.bf16.mxu0 0
      %1144 = vmatpush1.bf16.msra.mxu0 0
      %1145 = vmatprep.subr.bf16.mxu0 0
      %1146 = vmatpush1.bf16.msra.mxu0 0
      %1147 = vmatprep.subr.bf16.mxu0 0
      %1148 = vmatpush1.bf16.msra.mxu0 0
      %1149 = vmatprep.subr.bf16.mxu0 0
      %1150 = vmatpush1.bf16.msra.mxu0 0
      %1151 = vmatprep.subr.bf16.mxu0 0
      %1152 = vmatpush1.bf16.msra.mxu0 0
      %1153 = vmatprep.subr.bf16.mxu0 0
      %1154 = vmatpush1.bf16.msra.mxu0 0
      %1155 = vmatprep.subr.bf16.mxu0 0
      %1156 = vmatpush1.bf16.msra.mxu0 0
      %1157 = vmatprep.subr.bf16.mxu0 0
      %1158 = vmatpush1.bf16.msra.mxu0 0
      %1159 = vmatprep.subr.bf16.mxu0 0
      %1160 = vmatpush1.bf16.msra.mxu0 0
      %1161 = vmatprep.subr.bf16.mxu0 0
      %1162 = vmatpush1.bf16.msra.mxu0 0
      %1163 = vmatprep.subr.bf16.mxu0 0
      %1164 = vmatpush1.bf16.msra.mxu0 0
      %1165 = vmatprep.subr.bf16.mxu0 0
      %1166 = vmatpush1.bf16.msra.mxu0 0
      %1167 = vmatprep.subr.bf16.mxu0 0
      %1168 = vmatpush1.bf16.msra.mxu0 0
      %1169 = vmatprep.subr.bf16.mxu0 0
      %1170 = vmatpush1.bf16.msra.mxu0 0
      %1171 = vmatprep.mubr.bf16.mxu0 0
      %1172 = vmatmul.mubr.bf16.gmra.mrb[0].mxu0 %v1131
      %v1173 = vpop.f32.mrb[0].mxu0
      %v1174 = vadd.f32 0.0, %v1173
      %v1175 = vpop.f32.mrb[0].mxu0
      %v1176 = vadd.f32 0.0, %v1175
      %v1177 = vpop.f32.mrb[0].mxu0
      %v1178 = vpop.f32.mrb[0].mxu0
      %1179 = vdwg.mxu0
      %1180 = vrot.lane.b32.xlu0 %v939, 127
      %v1181 = vpop.permute.xlu0 %1180
      %1182 = vrot.lane.b32.xlu0 %v937, 127
      %v1183 = vpop.permute.xlu0 %1182
      %1184 = vrot.lane.b32.xlu0 %v941, 127
      %v1185 = vpop.permute.xlu0 %1184
      %v1186 = vsel %vm573, %v1181, %v1183
      %v1187 = vsel %vm573, %v1183, %v1185
      %v1189 = vsel %vm955, %v1119, 0
      %v1192 = vsel %vm959, %v1186, 0
      %v1195 = vsel %vm959, %v1187, 0
      %1197 = vmatprep.subr.bf16.mxu0 %v1195
      %1198 = vmatpush1.bf16.msra.mxu0 %v1192
      %1199 = vmatprep.subr.bf16.mxu0 0
      %1200 = vmatpush1.bf16.msra.mxu0 0
      %1201 = vmatprep.subr.bf16.mxu0 0
      %1202 = vmatpush1.bf16.msra.mxu0 0
      %1203 = vmatprep.subr.bf16.mxu0 0
      %1204 = vmatpush1.bf16.msra.mxu0 0
      %1205 = vmatprep.subr.bf16.mxu0 0
      %1206 = vmatpush1.bf16.msra.mxu0 0
      %1207 = vmatprep.subr.bf16.mxu0 0
      %1208 = vmatpush1.bf16.msra.mxu0 0
      %1209 = vmatprep.subr.bf16.mxu0 0
      %1210 = vmatpush1.bf16.msra.mxu0 0
      %1211 = vmatprep.subr.bf16.mxu0 0
      %1212 = vmatpush1.bf16.msra.mxu0 0
      %1213 = vmatprep.subr.bf16.mxu0 0
      %1214 = vmatpush1.bf16.msra.mxu0 0
      %1215 = vmatprep.subr.bf16.mxu0 0
      %1216 = vmatpush1.bf16.msra.mxu0 0
      %1217 = vmatprep.subr.bf16.mxu0 0
      %1218 = vmatpush1.bf16.msra.mxu0 0
      %1219 = vmatprep.subr.bf16.mxu0 0
      %1220 = vmatpush1.bf16.msra.mxu0 0
      %1221 = vmatprep.subr.bf16.mxu0 0
      %1222 = vmatpush1.bf16.msra.mxu0 0
      %1223 = vmatprep.subr.bf16.mxu0 0
      %1224 = vmatpush1.bf16.msra.mxu0 0
      %1225 = vmatprep.subr.bf16.mxu0 0
      %1226 = vmatpush1.bf16.msra.mxu0 0
      %1227 = vmatprep.subr.bf16.mxu0 0
      %1228 = vmatpush1.bf16.msra.mxu0 0
      %1229 = vmatprep.mubr.bf16.mxu0 0
      %1230 = vmatmul.mubr.bf16.gmra.mrb[0].mxu0 %v1189
      %v1231 = vpop.f32.mrb[0].mxu0
      %v1232 = vadd.f32 %v1174, %v1231
      %v1233 = vpop.f32.mrb[0].mxu0
      %v1234 = vadd.f32 %v1176, %v1233
      %v1235 = vpop.f32.mrb[0].mxu0
      %v1236 = vpop.f32.mrb[0].mxu0
      %1237 = vdwg.mxu0
      %s1238 = scalar_lea.vmem %s3, 14
      %v1239 = vld [vmem:[%s1238] sm:$0x3]
      %1240 = vrot.lane.b32.xlu0 %v939, 95
      %v1241 = vpop.permute.xlu0 %1240
      %1242 = vrot.lane.b32.xlu0 %v937, 95
      %v1243 = vpop.permute.xlu0 %1242
      %1244 = vrot.lane.b32.xlu0 %v941, 95
      %v1245 = vpop.permute.xlu0 %1244
      %v1246 = vsel %vm634, %v1241, %v1243
      %v1247 = vsel %vm634, %v1243, %v1245
      %v1249 = vsel %vm955, %v1239, 0
      %v1252 = vsel %vm959, %v1246, 0
      %v1255 = vsel %vm959, %v1247, 0
      %1257 = vmatprep.subr.bf16.mxu0 %v1255
      %1258 = vmatpush1.bf16.msra.mxu0 %v1252
      %1259 = vmatprep.subr.bf16.mxu0 0
      %1260 = vmatpush1.bf16.msra.mxu0 0
      %1261 = vmatprep.subr.bf16.mxu0 0
      %1262 = vmatpush1.bf16.msra.mxu0 0
      %1263 = vmatprep.subr.bf16.mxu0 0
      %1264 = vmatpush1.bf16.msra.mxu0 0
      %1265 = vmatprep.subr.bf16.mxu0 0
      %1266 = vmatpush1.bf16.msra.mxu0 0
      %1267 = vmatprep.subr.bf16.mxu0 0
      %1268 = vmatpush1.bf16.msra.mxu0 0
      %1269 = vmatprep.subr.bf16.mxu0 0
      %1270 = vmatpush1.bf16.msra.mxu0 0
      %1271 = vmatprep.subr.bf16.mxu0 0
      %1272 = vmatpush1.bf16.msra.mxu0 0
      %1273 = vmatprep.subr.bf16.mxu0 0
      %1274 = vmatpush1.bf16.msra.mxu0 0
      %1275 = vmatprep.subr.bf16.mxu0 0
      %1276 = vmatpush1.bf16.msra.mxu0 0
      %1277 = vmatprep.subr.bf16.mxu0 0
      %1278 = vmatpush1.bf16.msra.mxu0 0
      %1279 = vmatprep.subr.bf16.mxu0 0
      %1280 = vmatpush1.bf16.msra.mxu0 0
      %1281 = vmatprep.subr.bf16.mxu0 0
      %1282 = vmatpush1.bf16.msra.mxu0 0
      %1283 = vmatprep.subr.bf16.mxu0 0
      %1284 = vmatpush1.bf16.msra.mxu0 0
      %1285 = vmatprep.subr.bf16.mxu0 0
      %1286 = vmatpush1.bf16.msra.mxu0 0
      %1287 = vmatprep.subr.bf16.mxu0 0
      %1288 = vmatpush1.bf16.msra.mxu0 0
      %1289 = vmatprep.mubr.bf16.mxu0 0
      %1290 = vmatmul.mubr.bf16.gmra.mrb[0].mxu0 %v1249
      %v1291 = vpop.f32.mrb[0].mxu0
      %v1292 = vadd.f32 0.0, %v1291
      %v1293 = vpop.f32.mrb[0].mxu0
      %v1294 = vadd.f32 0.0, %v1293
      %v1295 = vpop.f32.mrb[0].mxu0
      %v1296 = vpop.f32.mrb[0].mxu0
      %1297 = vdwg.mxu0
      %v1298 = vadd.f32 %v1232, %v1292
      %v1299 = vadd.f32 %v1234, %v1294
      %s1300 = scalar_lea.vmem %s3, 4
      %v1301 = vld [vmem:[%s1300] sm:$0x3]
      %s1302 = scalar_lea.vmem %s3, 10
      %v1303 = vld [vmem:[%s1302] sm:$0x3]
      %1304 = vrot.lane.b32.xlu0 %v939, 110
      %v1305 = vpop.permute.xlu0 %1304
      %1306 = vrot.lane.b32.xlu0 %v937, 110
      %v1307 = vpop.permute.xlu0 %1306
      %1308 = vrot.lane.b32.xlu0 %v941, 110
      %v1309 = vpop.permute.xlu0 %1308
      %v1310 = vsel %vm699, %v1305, %v1307
      %v1311 = vsel %vm699, %v1307, %v1309
      %v1313 = vsel %vm955, %v1303, 0
      %v1316 = vsel %vm959, %v1310, 0
      %v1319 = vsel %vm959, %v1311, 0
      %1321 = vmatprep.subr.bf16.mxu0 %v1319
      %1322 = vmatpush1.bf16.msra.mxu0 %v1316
      %1323 = vmatprep.subr.bf16.mxu0 0
      %1324 = vmatpush1.bf16.msra.mxu0 0
      %1325 = vmatprep.subr.bf16.mxu0 0
      %1326 = vmatpush1.bf16.msra.mxu0 0
      %1327 = vmatprep.subr.bf16.mxu0 0
      %1328 = vmatpush1.bf16.msra.mxu0 0
      %1329 = vmatprep.subr.bf16.mxu0 0
      %1330 = vmatpush1.bf16.msra.mxu0 0
      %1331 = vmatprep.subr.bf16.mxu0 0
      %1332 = vmatpush1.bf16.msra.mxu0 0
      %1333 = vmatprep.subr.bf16.mxu0 0
      %1334 = vmatpush1.bf16.msra.mxu0 0
      %1335 = vmatprep.subr.bf16.mxu0 0
      %1336 = vmatpush1.bf16.msra.mxu0 0
      %1337 = vmatprep.subr.bf16.mxu0 0
      %1338 = vmatpush1.bf16.msra.mxu0 0
      %1339 = vmatprep.subr.bf16.mxu0 0
      %1340 = vmatpush1.bf16.msra.mxu0 0
      %1341 = vmatprep.subr.bf16.mxu0 0
      %1342 = vmatpush1.bf16.msra.mxu0 0
      %1343 = vmatprep.subr.bf16.mxu0 0
      %1344 = vmatpush1.bf16.msra.mxu0 0
      %1345 = vmatprep.subr.bf16.mxu0 0
      %1346 = vmatpush1.bf16.msra.mxu0 0
      %1347 = vmatprep.subr.bf16.mxu0 0
      %1348 = vmatpush1.bf16.msra.mxu0 0
      %1349 = vmatprep.subr.bf16.mxu0 0
      %1350 = vmatpush1.bf16.msra.mxu0 0
      %1351 = vmatprep.subr.bf16.mxu0 0
      %1352 = vmatpush1.bf16.msra.mxu0 0
      %1353 = vmatprep.mubr.bf16.mxu0 0
      %1354 = vmatmul.mubr.bf16.gmra.mrb[0].mxu0 %v1313
      %v1355 = vpop.f32.mrb[0].mxu0
      %v1356 = vadd.f32 0.0, %v1355
      %v1357 = vpop.f32.mrb[0].mxu0
      %v1358 = vadd.f32 0.0, %v1357
      %v1359 = vpop.f32.mrb[0].mxu0
      %v1360 = vpop.f32.mrb[0].mxu0
      %1361 = vdwg.mxu0
      %1362 = vrot.lane.b32.xlu0 %v939, 126
      %v1363 = vpop.permute.xlu0 %1362
      %1364 = vrot.lane.b32.xlu0 %v937, 126
      %v1365 = vpop.permute.xlu0 %1364
      %1366 = vrot.lane.b32.xlu0 %v941, 126
      %v1367 = vpop.permute.xlu0 %1366
      %v1368 = vsel %vm758, %v1363, %v1365
      %v1369 = vsel %vm758, %v1365, %v1367
      %v1371 = vsel %vm955, %v1301, 0
      %v1374 = vsel %vm959, %v1368, 0
      %v1377 = vsel %vm959, %v1369, 0
      %1379 = vmatprep.subr.bf16.mxu0 %v1377
      %1380 = vmatpush1.bf16.msra.mxu0 %v1374
      %1381 = vmatprep.subr.bf16.mxu0 0
      %1382 = vmatpush1.bf16.msra.mxu0 0
      %1383 = vmatprep.subr.bf16.mxu0 0
      %1384 = vmatpush1.bf16.msra.mxu0 0
      %1385 = vmatprep.subr.bf16.mxu0 0
      %1386 = vmatpush1.bf16.msra.mxu0 0
      %1387 = vmatprep.subr.bf16.mxu0 0
      %1388 = vmatpush1.bf16.msra.mxu0 0
      %1389 = vmatprep.subr.bf16.mxu0 0
      %1390 = vmatpush1.bf16.msra.mxu0 0
      %1391 = vmatprep.subr.bf16.mxu0 0
      %1392 = vmatpush1.bf16.msra.mxu0 0
      %1393 = vmatprep.subr.bf16.mxu0 0
      %1394 = vmatpush1.bf16.msra.mxu0 0
      %1395 = vmatprep.subr.bf16.mxu0 0
      %1396 = vmatpush1.bf16.msra.mxu0 0
      %1397 = vmatprep.subr.bf16.mxu0 0
      %1398 = vmatpush1.bf16.msra.mxu0 0
      %1399 = vmatprep.subr.bf16.mxu0 0
      %1400 = vmatpush1.bf16.msra.mxu0 0
      %1401 = vmatprep.subr.bf16.mxu0 0
      %1402 = vmatpush1.bf16.msra.mxu0 0
      %1403 = vmatprep.subr.bf16.mxu0 0
      %1404 = vmatpush1.bf16.msra.mxu0 0
      %1405 = vmatprep.subr.bf16.mxu0 0
      %1406 = vmatpush1.bf16.msra.mxu0 0
      %1407 = vmatprep.subr.bf16.mxu0 0
      %1408 = vmatpush1.bf16.msra.mxu0 0
      %1409 = vmatprep.subr.bf16.mxu0 0
      %1410 = vmatpush1.bf16.msra.mxu0 0
      %1411 = vmatprep.mubr.bf16.mxu0 0
      %1412 = vmatmul.mubr.bf16.gmra.mrb[0].mxu0 %v1371
      %v1413 = vpop.f32.mrb[0].mxu0
      %v1414 = vadd.f32 %v1356, %v1413
      %v1415 = vpop.f32.mrb[0].mxu0
      %v1416 = vadd.f32 %v1358, %v1415
      %v1417 = vpop.f32.mrb[0].mxu0
      %v1418 = vpop.f32.mrb[0].mxu0
      %1419 = vdwg.mxu0
      %s1420 = scalar_lea.vmem %s3, 16
      %v1421 = vld [vmem:[%s1420] sm:$0x3]
      %1422 = vrot.lane.b32.xlu0 %v939, 94
      %v1423 = vpop.permute.xlu0 %1422
      %1424 = vrot.lane.b32.xlu0 %v937, 94
      %v1425 = vpop.permute.xlu0 %1424
      %1426 = vrot.lane.b32.xlu0 %v941, 94
      %v1427 = vpop.permute.xlu0 %1426
      %v1428 = vsel %vm819, %v1423, %v1425
      %v1429 = vsel %vm819, %v1425, %v1427
      %v1431 = vsel %vm955, %v1421, 0
      %v1434 = vsel %vm959, %v1428, 0
      %v1437 = vsel %vm959, %v1429, 0
      %1439 = vmatprep.subr.bf16.mxu0 %v1437
      %1440 = vmatpush1.bf16.msra.mxu0 %v1434
      %1441 = vmatprep.subr.bf16.mxu0 0
      %1442 = vmatpush1.bf16.msra.mxu0 0
      %1443 = vmatprep.subr.bf16.mxu0 0
      %1444 = vmatpush1.bf16.msra.mxu0 0
      %1445 = vmatprep.subr.bf16.mxu0 0
      %1446 = vmatpush1.bf16.msra.mxu0 0
      %1447 = vmatprep.subr.bf16.mxu0 0
      %1448 = vmatpush1.bf16.msra.mxu0 0
      %1449 = vmatprep.subr.bf16.mxu0 0
      %1450 = vmatpush1.bf16.msra.mxu0 0
      %1451 = vmatprep.subr.bf16.mxu0 0
      %1452 = vmatpush1.bf16.msra.mxu0 0
      %1453 = vmatprep.subr.bf16.mxu0 0
      %1454 = vmatpush1.bf16.msra.mxu0 0
      %1455 = vmatprep.subr.bf16.mxu0 0
      %1456 = vmatpush1.bf16.msra.mxu0 0
      %1457 = vmatprep.subr.bf16.mxu0 0
      %1458 = vmatpush1.bf16.msra.mxu0 0
      %1459 = vmatprep.subr.bf16.mxu0 0
      %1460 = vmatpush1.bf16.msra.mxu0 0
      %1461 = vmatprep.subr.bf16.mxu0 0
      %1462 = vmatpush1.bf16.msra.mxu0 0
      %1463 = vmatprep.subr.bf16.mxu0 0
      %1464 = vmatpush1.bf16.msra.mxu0 0
      %1465 = vmatprep.subr.bf16.mxu0 0
      %1466 = vmatpush1.bf16.msra.mxu0 0
      %1467 = vmatprep.subr.bf16.mxu0 0
      %1468 = vmatpush1.bf16.msra.mxu0 0
      %1469 = vmatprep.subr.bf16.mxu0 0
      %1470 = vmatpush1.bf16.msra.mxu0 0
      %1471 = vmatprep.mubr.bf16.mxu0 0
      %1472 = vmatmul.mubr.bf16.gmra.mrb[0].mxu0 %v1431
      %v1473 = vpop.f32.mrb[0].mxu0
      %v1474 = vadd.f32 0.0, %v1473
      %v1475 = vpop.f32.mrb[0].mxu0
      %v1476 = vadd.f32 0.0, %v1475
      %v1477 = vpop.f32.mrb[0].mxu0
      %v1478 = vpop.f32.mrb[0].mxu0
      %1479 = vdwg.mxu0
      %v1480 = vadd.f32 %v1414, %v1474
      %v1481 = vadd.f32 %v1416, %v1476
      %v1482 = vmul.f32 %v1116, %v888
      %v1483 = vmul.f32 %v1117, %v892
      %v1484 = vadd.f32 %v1482, %v1298
      %v1485 = vadd.f32 %v1483, %v1299
      %v1486 = vmul.f32 %v1480, %v910
      %v1487 = vmul.f32 %v1481, %v914
      %v1488 = vadd.f32 %v1484, %v1486
      %v1489 = vadd.f32 %v1485, %v1487
      %v1490 = vld [vmem:[%s4] sm:$0xf]
      %1492 = vset.pattern.permute.xlu0 0
      %1493 = vperm.xlu0 %1492, %v1490
      %v1494 = vpop.permute.xlu0 %1493
      %v1496 = vadd.f32 %v1488, %v1494
      %v1497 = vadd.f32 %v1489, %v1494
      %v1498 = vmax.f32 %v1496, 0.0
      %v1499 = vmax.f32 %v1497, 0.0
      %v1500 = vpack.c.bf16 %v1498, %v1498
      %v1501 = vpack.c.bf16 %v1499, %v1499
      %1504 = vrot.lane.b32.xlu0 %v1500, 17
      %v1505 = vpop.permute.xlu0 %1504
      %1506 = vrot.lane.b32.xlu0 %v1501, 17
      %v1507 = vpop.permute.xlu0 %1506
      %v1508 = vsel %vm318, %v1505, %v1507
      %v1510 = vsel %vm320, 0, %v1505
      %v1512 = vsel %vm320, %v1507, 0
      %v1513 = vld [vmem:[%s6] sm:$0x3]
      %s1514 = scalar_lea.vmem %s5, 4
      %v1515 = vld [vmem:[%s1514] sm:$0x1]
      %1517 = vset.pattern.permute.xlu0 0
      %1518 = vperm.xlu0 %1517, %v1513
      %v1519 = vpop.permute.xlu0 %1518
      %1523 = vrot.lane.b32.xlu0 %v1510, 111
      %v1524 = vpop.permute.xlu0 %1523
      %1525 = vrot.lane.b32.xlu0 %v1508, 111
      %v1526 = vpop.permute.xlu0 %1525
      %1527 = vrot.lane.b32.xlu0 %v1512, 111
      %v1528 = vpop.permute.xlu0 %1527
      %v1529 = vsel %vm514, %v1524, %v1526
      %v1530 = vsel %vm514, %v1526, %v1528
      %v1532 = vsel %vm955, %v1515, 0
      %v1535 = vsel %vm959, %v1529, 0
      %v1538 = vsel %vm959, %v1530, 0
      %1540 = vmatprep.subr.bf16.mxu0 %v1538
      %1541 = vmatpush1.bf16.msra.mxu0 %v1535
      %1542 = vmatprep.subr.bf16.mxu0 0
      %1543 = vmatpush1.bf16.msra.mxu0 0
      %1544 = vmatprep.subr.bf16.mxu0 0
      %1545 = vmatpush1.bf16.msra.mxu0 0
      %1546 = vmatprep.subr.bf16.mxu0 0
      %1547 = vmatpush1.bf16.msra.mxu0 0
      %1548 = vmatprep.subr.bf16.mxu0 0
      %1549 = vmatpush1.bf16.msra.mxu0 0
      %1550 = vmatprep.subr.bf16.mxu0 0
      %1551 = vmatpush1.bf16.msra.mxu0 0
      %1552 = vmatprep.subr.bf16.mxu0 0
      %1553 = vmatpush1.bf16.msra.mxu0 0
      %1554 = vmatprep.subr.bf16.mxu0 0
      %1555 = vmatpush1.bf16.msra.mxu0 0
      %1556 = vmatprep.subr.bf16.mxu0 0
      %1557 = vmatpush1.bf16.msra.mxu0 0
      %1558 = vmatprep.subr.bf16.mxu0 0
      %1559 = vmatpush1.bf16.msra.mxu0 0
      %1560 = vmatprep.subr.bf16.mxu0 0
      %1561 = vmatpush1.bf16.msra.mxu0 0
      %1562 = vmatprep.subr.bf16.mxu0 0
      %1563 = vmatpush1.bf16.msra.mxu0 0
      %1564 = vmatprep.subr.bf16.mxu0 0
      %1565 = vmatpush1.bf16.msra.mxu0 0
      %1566 = vmatprep.subr.bf16.mxu0 0
      %1567 = vmatpush1.bf16.msra.mxu0 0
      %1568 = vmatprep.subr.bf16.mxu0 0
      %1569 = vmatpush1.bf16.msra.mxu0 0
      %1570 = vmatprep.subr.bf16.mxu0 0
      %1571 = vmatpush1.bf16.msra.mxu0 0
      %1572 = vmatprep.mubr.bf16.mxu0 0
      %1573 = vmatmul.mubr.bf16.gmra.mrb[0].mxu0 %v1532
      %v1574 = vpop.f32.mrb[0].mxu0
      %v1575 = vadd.f32 %v1519, %v1574
      %v1576 = vpop.f32.mrb[0].mxu0
      %v1577 = vadd.f32 %v1519, %v1576
      %v1578 = vpop.f32.mrb[0].mxu0
      %v1579 = vpop.f32.mrb[0].mxu0
      %1580 = vdwg.mxu0
      %v1581 = vmax.f32 %v1575, 0.0
      %v1582 = vmax.f32 %v1577, 0.0
      %s1583 = scalar_lea.vmem %s5, 5
      %v1584 = vld [vmem:[%s1583] sm:$0x1]
      %s1585 = scalar_lea.vmem %s5, 3
      %v1586 = vld [vmem:[%s1585] sm:$0x1]
      %1587 = vrot.lane.b32.xlu0 %v1510, 110
      %v1588 = vpop.permute.xlu0 %1587
      %1589 = vrot.lane.b32.xlu0 %v1508, 110
      %v1590 = vpop.permute.xlu0 %1589
      %1591 = vrot.lane.b32.xlu0 %v1512, 110
      %v1592 = vpop.permute.xlu0 %1591
      %v1593 = vsel %vm699, %v1588, %v1590
      %v1594 = vsel %vm699, %v1590, %v1592
      %v1596 = vsel %vm955, %v1586, 0
      %v1599 = vsel %vm959, %v1593, 0
      %v1602 = vsel %vm959, %v1594, 0
      %1604 = vmatprep.subr.bf16.mxu0 %v1602
      %1605 = vmatpush1.bf16.msra.mxu0 %v1599
      %1606 = vmatprep.subr.bf16.mxu0 0
      %1607 = vmatpush1.bf16.msra.mxu0 0
      %1608 = vmatprep.subr.bf16.mxu0 0
      %1609 = vmatpush1.bf16.msra.mxu0 0
      %1610 = vmatprep.subr.bf16.mxu0 0
      %1611 = vmatpush1.bf16.msra.mxu0 0
      %1612 = vmatprep.subr.bf16.mxu0 0
      %1613 = vmatpush1.bf16.msra.mxu0 0
      %1614 = vmatprep.subr.bf16.mxu0 0
      %1615 = vmatpush1.bf16.msra.mxu0 0
      %1616 = vmatprep.subr.bf16.mxu0 0
      %1617 = vmatpush1.bf16.msra.mxu0 0
      %1618 = vmatprep.subr.bf16.mxu0 0
      %1619 = vmatpush1.bf16.msra.mxu0 0
      %1620 = vmatprep.subr.bf16.mxu0 0
      %1621 = vmatpush1.bf16.msra.mxu0 0
      %1622 = vmatprep.subr.bf16.mxu0 0
      %1623 = vmatpush1.bf16.msra.mxu0 0
      %1624 = vmatprep.subr.bf16.mxu0 0
      %1625 = vmatpush1.bf16.msra.mxu0 0
      %1626 = vmatprep.subr.bf16.mxu0 0
      %1627 = vmatpush1.bf16.msra.mxu0 0
      %1628 = vmatprep.subr.bf16.mxu0 0
      %1629 = vmatpush1.bf16.msra.mxu0 0
      %1630 = vmatprep.subr.bf16.mxu0 0
      %1631 = vmatpush1.bf16.msra.mxu0 0
      %1632 = vmatprep.subr.bf16.mxu0 0
      %1633 = vmatpush1.bf16.msra.mxu0 0
      %1634 = vmatprep.subr.bf16.mxu0 0
      %1635 = vmatpush1.bf16.msra.mxu0 0
      %1636 = vmatprep.mubr.bf16.mxu0 0
      %1637 = vmatmul.mubr.bf16.gmra.mrb[0].mxu0 %v1596
      %v1638 = vpop.f32.mrb[0].mxu0
      %v1639 = vadd.f32 0.0, %v1638
      %v1640 = vpop.f32.mrb[0].mxu0
      %v1641 = vadd.f32 0.0, %v1640
      %v1642 = vpop.f32.mrb[0].mxu0
      %v1643 = vpop.f32.mrb[0].mxu0
      %1644 = vdwg.mxu0
      %v1645 = vmul.f32 %v1639, %v910
      %v1646 = vmul.f32 %v1641, %v914
      %v1648 = vsel %vm955, %v1584, 0
      %1650 = vmatprep.subr.bf16.mxu0 %v1538
      %1651 = vmatpush1.bf16.msra.mxu0 %v1535
      %1652 = vmatprep.subr.bf16.mxu0 0
      %1653 = vmatpush1.bf16.msra.mxu0 0
      %1654 = vmatprep.subr.bf16.mxu0 0
      %1655 = vmatpush1.bf16.msra.mxu0 0
      %1656 = vmatprep.subr.bf16.mxu0 0
      %1657 = vmatpush1.bf16.msra.mxu0 0
      %1658 = vmatprep.subr.bf16.mxu0 0
      %1659 = vmatpush1.bf16.msra.mxu0 0
      %1660 = vmatprep.subr.bf16.mxu0 0
      %1661 = vmatpush1.bf16.msra.mxu0 0
      %1662 = vmatprep.subr.bf16.mxu0 0
      %1663 = vmatpush1.bf16.msra.mxu0 0
      %1664 = vmatprep.subr.bf16.mxu0 0
      %1665 = vmatpush1.bf16.msra.mxu0 0
      %1666 = vmatprep.subr.bf16.mxu0 0
      %1667 = vmatpush1.bf16.msra.mxu0 0
      %1668 = vmatprep.subr.bf16.mxu0 0
      %1669 = vmatpush1.bf16.msra.mxu0 0
      %1670 = vmatprep.subr.bf16.mxu0 0
      %1671 = vmatpush1.bf16.msra.mxu0 0
      %1672 = vmatprep.subr.bf16.mxu0 0
      %1673 = vmatpush1.bf16.msra.mxu0 0
      %1674 = vmatprep.subr.bf16.mxu0 0
      %1675 = vmatpush1.bf16.msra.mxu0 0
      %1676 = vmatprep.subr.bf16.mxu0 0
      %1677 = vmatpush1.bf16.msra.mxu0 0
      %1678 = vmatprep.subr.bf16.mxu0 0
      %1679 = vmatpush1.bf16.msra.mxu0 0
      %1680 = vmatprep.subr.bf16.mxu0 0
      %1681 = vmatpush1.bf16.msra.mxu0 0
      %1682 = vmatprep.mubr.bf16.mxu0 0
      %1683 = vmatmul.mubr.bf16.gmra.mrb[0].mxu0 %v1648
      %v1684 = vpop.f32.mrb[0].mxu0
      %v1685 = vadd.f32 %v1645, %v1684
      %v1686 = vpop.f32.mrb[0].mxu0
      %v1687 = vadd.f32 %v1646, %v1686
      %v1688 = vpop.f32.mrb[0].mxu0
      %v1689 = vpop.f32.mrb[0].mxu0
      %1690 = vdwg.mxu0
      %v1691 = vadd.f32 %v1685, %v1519
      %v1692 = vadd.f32 %v1687, %v1519
      %v1693 = vmax.f32 %v1691, 0.0
      %v1694 = vmax.f32 %v1692, 0.0
      %s1695 = scalar_lea.vmem %s5, 7
      %v1696 = vld [vmem:[%s1695] sm:$0x1]
      %s1697 = scalar_lea.vmem %s5, 1
      %v1698 = vld [vmem:[%s1697] sm:$0x1]
      %1699 = vrot.lane.b32.xlu0 %v1510, 95
      %v1700 = vpop.permute.xlu0 %1699
      %1701 = vrot.lane.b32.xlu0 %v1508, 95
      %v1702 = vpop.permute.xlu0 %1701
      %1703 = vrot.lane.b32.xlu0 %v1512, 95
      %v1704 = vpop.permute.xlu0 %1703
      %v1705 = vsel %vm634, %v1700, %v1702
      %v1706 = vsel %vm634, %v1702, %v1704
      %v1708 = vsel %vm955, %v1698, 0
      %v1711 = vsel %vm959, %v1705, 0
      %v1714 = vsel %vm959, %v1706, 0
      %1716 = vmatprep.subr.bf16.mxu0 %v1714
      %1717 = vmatpush1.bf16.msra.mxu0 %v1711
      %1718 = vmatprep.subr.bf16.mxu0 0
      %1719 = vmatpush1.bf16.msra.mxu0 0
      %1720 = vmatprep.subr.bf16.mxu0 0
      %1721 = vmatpush1.bf16.msra.mxu0 0
      %1722 = vmatprep.subr.bf16.mxu0 0
      %1723 = vmatpush1.bf16.msra.mxu0 0
      %1724 = vmatprep.subr.bf16.mxu0 0
      %1725 = vmatpush1.bf16.msra.mxu0 0
      %1726 = vmatprep.subr.bf16.mxu0 0
      %1727 = vmatpush1.bf16.msra.mxu0 0
      %1728 = vmatprep.subr.bf16.mxu0 0
      %1729 = vmatpush1.bf16.msra.mxu0 0
      %1730 = vmatprep.subr.bf16.mxu0 0
      %1731 = vmatpush1.bf16.msra.mxu0 0
      %1732 = vmatprep.subr.bf16.mxu0 0
      %1733 = vmatpush1.bf16.msra.mxu0 0
      %1734 = vmatprep.subr.bf16.mxu0 0
      %1735 = vmatpush1.bf16.msra.mxu0 0
      %1736 = vmatprep.subr.bf16.mxu0 0
      %1737 = vmatpush1.bf16.msra.mxu0 0
      %1738 = vmatprep.subr.bf16.mxu0 0
      %1739 = vmatpush1.bf16.msra.mxu0 0
      %1740 = vmatprep.subr.bf16.mxu0 0
      %1741 = vmatpush1.bf16.msra.mxu0 0
      %1742 = vmatprep.subr.bf16.mxu0 0
      %1743 = vmatpush1.bf16.msra.mxu0 0
      %1744 = vmatprep.subr.bf16.mxu0 0
      %1745 = vmatpush1.bf16.msra.mxu0 0
      %1746 = vmatprep.subr.bf16.mxu0 0
      %1747 = vmatpush1.bf16.msra.mxu0 0
      %1748 = vmatprep.mubr.bf16.mxu0 0
      %1749 = vmatmul.mubr.bf16.gmra.mrb[0].mxu0 %v1708
      %v1750 = vpop.f32.mrb[0].mxu0
      %v1751 = vadd.f32 0.0, %v1750
      %v1752 = vpop.f32.mrb[0].mxu0
      %v1753 = vadd.f32 0.0, %v1752
      %v1754 = vpop.f32.mrb[0].mxu0
      %v1755 = vpop.f32.mrb[0].mxu0
      %1756 = vdwg.mxu0
      %v1758 = vsel %vm955, %v1696, 0
      %1760 = vmatprep.subr.bf16.mxu0 %v1538
      %1761 = vmatpush1.bf16.msra.mxu0 %v1535
      %1762 = vmatprep.subr.bf16.mxu0 0
      %1763 = vmatpush1.bf16.msra.mxu0 0
      %1764 = vmatprep.subr.bf16.mxu0 0
      %1765 = vmatpush1.bf16.msra.mxu0 0
      %1766 = vmatprep.subr.bf16.mxu0 0
      %1767 = vmatpush1.bf16.msra.mxu0 0
      %1768 = vmatprep.subr.bf16.mxu0 0
      %1769 = vmatpush1.bf16.msra.mxu0 0
      %1770 = vmatprep.subr.bf16.mxu0 0
      %1771 = vmatpush1.bf16.msra.mxu0 0
      %1772 = vmatprep.subr.bf16.mxu0 0
      %1773 = vmatpush1.bf16.msra.mxu0 0
      %1774 = vmatprep.subr.bf16.mxu0 0
      %1775 = vmatpush1.bf16.msra.mxu0 0
      %1776 = vmatprep.subr.bf16.mxu0 0
      %1777 = vmatpush1.bf16.msra.mxu0 0
      %1778 = vmatprep.subr.bf16.mxu0 0
      %1779 = vmatpush1.bf16.msra.mxu0 0
      %1780 = vmatprep.subr.bf16.mxu0 0
      %1781 = vmatpush1.bf16.msra.mxu0 0
      %1782 = vmatprep.subr.bf16.mxu0 0
      %1783 = vmatpush1.bf16.msra.mxu0 0
      %1784 = vmatprep.subr.bf16.mxu0 0
      %1785 = vmatpush1.bf16.msra.mxu0 0
      %1786 = vmatprep.subr.bf16.mxu0 0
      %1787 = vmatpush1.bf16.msra.mxu0 0
      %1788 = vmatprep.subr.bf16.mxu0 0
      %1789 = vmatpush1.bf16.msra.mxu0 0
      %1790 = vmatprep.subr.bf16.mxu0 0
      %1791 = vmatpush1.bf16.msra.mxu0 0
      %1792 = vmatprep.mubr.bf16.mxu0 0
      %1793 = vmatmul.mubr.bf16.gmra.mrb[0].mxu0 %v1758
      %v1794 = vpop.f32.mrb[0].mxu0
      %v1795 = vadd.f32 %v1751, %v1794
      %v1796 = vpop.f32.mrb[0].mxu0
      %v1797 = vadd.f32 %v1753, %v1796
      %v1798 = vpop.f32.mrb[0].mxu0
      %v1799 = vpop.f32.mrb[0].mxu0
      %1800 = vdwg.mxu0
      %v1801 = vadd.f32 %v1795, %v1519
      %v1802 = vadd.f32 %v1797, %v1519
      %v1803 = vmax.f32 %v1801, 0.0
      %v1804 = vmax.f32 %v1802, 0.0
      %s1805 = scalar_lea.vmem %s5, 8
      %v1806 = vld [vmem:[%s1805] sm:$0x1]
      %s1807 = scalar_lea.vmem %s5, 6
      %v1808 = vld [vmem:[%s1807] sm:$0x1]
      %s1809 = scalar_lea.vmem %s5, 2
      %v1810 = vld [vmem:[%s1809] sm:$0x1]
      %v1812 = vsel %vm955, %v1810, 0
      %1814 = vmatprep.subr.bf16.mxu0 %v1714
      %1815 = vmatpush1.bf16.msra.mxu0 %v1711
      %1816 = vmatprep.subr.bf16.mxu0 0
      %1817 = vmatpush1.bf16.msra.mxu0 0
      %1818 = vmatprep.subr.bf16.mxu0 0
      %1819 = vmatpush1.bf16.msra.mxu0 0
      %1820 = vmatprep.subr.bf16.mxu0 0
      %1821 = vmatpush1.bf16.msra.mxu0 0
      %1822 = vmatprep.subr.bf16.mxu0 0
      %1823 = vmatpush1.bf16.msra.mxu0 0
      %1824 = vmatprep.subr.bf16.mxu0 0
      %1825 = vmatpush1.bf16.msra.mxu0 0
      %1826 = vmatprep.subr.bf16.mxu0 0
      %1827 = vmatpush1.bf16.msra.mxu0 0
      %1828 = vmatprep.subr.bf16.mxu0 0
      %1829 = vmatpush1.bf16.msra.mxu0 0
      %1830 = vmatprep.subr.bf16.mxu0 0
      %1831 = vmatpush1.bf16.msra.mxu0 0
      %1832 = vmatprep.subr.bf16.mxu0 0
      %1833 = vmatpush1.bf16.msra.mxu0 0
      %1834 = vmatprep.subr.bf16.mxu0 0
      %1835 = vmatpush1.bf16.msra.mxu0 0
      %1836 = vmatprep.subr.bf16.mxu0 0
      %1837 = vmatpush1.bf16.msra.mxu0 0
      %1838 = vmatprep.subr.bf16.mxu0 0
      %1839 = vmatpush1.bf16.msra.mxu0 0
      %1840 = vmatprep.subr.bf16.mxu0 0
      %1841 = vmatpush1.bf16.msra.mxu0 0
      %1842 = vmatprep.subr.bf16.mxu0 0
      %1843 = vmatpush1.bf16.msra.mxu0 0
      %1844 = vmatprep.subr.bf16.mxu0 0
      %1845 = vmatpush1.bf16.msra.mxu0 0
      %1846 = vmatprep.mubr.bf16.mxu0 0
      %1847 = vmatmul.mubr.bf16.gmra.mrb[0].mxu0 %v1812
      %v1848 = vpop.f32.mrb[0].mxu0
      %v1849 = vadd.f32 0.0, %v1848
      %v1850 = vpop.f32.mrb[0].mxu0
      %v1851 = vadd.f32 0.0, %v1850
      %v1852 = vpop.f32.mrb[0].mxu0
      %v1853 = vpop.f32.mrb[0].mxu0
      %1854 = vdwg.mxu0
      %v1856 = vsel %vm955, %v1806, 0
      %1858 = vmatprep.subr.bf16.mxu0 %v1538
      %1859 = vmatpush1.bf16.msra.mxu0 %v1535
      %1860 = vmatprep.subr.bf16.mxu0 0
      %1861 = vmatpush1.bf16.msra.mxu0 0
      %1862 = vmatprep.subr.bf16.mxu0 0
      %1863 = vmatpush1.bf16.msra.mxu0 0
      %1864 = vmatprep.subr.bf16.mxu0 0
      %1865 = vmatpush1.bf16.msra.mxu0 0
      %1866 = vmatprep.subr.bf16.mxu0 0
      %1867 = vmatpush1.bf16.msra.mxu0 0
      %1868 = vmatprep.subr.bf16.mxu0 0
      %1869 = vmatpush1.bf16.msra.mxu0 0
      %1870 = vmatprep.subr.bf16.mxu0 0
      %1871 = vmatpush1.bf16.msra.mxu0 0
      %1872 = vmatprep.subr.bf16.mxu0 0
      %1873 = vmatpush1.bf16.msra.mxu0 0
      %1874 = vmatprep.subr.bf16.mxu0 0
      %1875 = vmatpush1.bf16.msra.mxu0 0
      %1876 = vmatprep.subr.bf16.mxu0 0
      %1877 = vmatpush1.bf16.msra.mxu0 0
      %1878 = vmatprep.subr.bf16.mxu0 0
      %1879 = vmatpush1.bf16.msra.mxu0 0
      %1880 = vmatprep.subr.bf16.mxu0 0
      %1881 = vmatpush1.bf16.msra.mxu0 0
      %1882 = vmatprep.subr.bf16.mxu0 0
      %1883 = vmatpush1.bf16.msra.mxu0 0
      %1884 = vmatprep.subr.bf16.mxu0 0
      %1885 = vmatpush1.bf16.msra.mxu0 0
      %1886 = vmatprep.subr.bf16.mxu0 0
      %1887 = vmatpush1.bf16.msra.mxu0 0
      %1888 = vmatprep.subr.bf16.mxu0 0
      %1889 = vmatpush1.bf16.msra.mxu0 0
      %1890 = vmatprep.mubr.bf16.mxu0 0
      %1891 = vmatmul.mubr.bf16.gmra.mrb[0].mxu0 %v1856
      %v1892 = vpop.f32.mrb[0].mxu0
      %v1893 = vadd.f32 %v1849, %v1892
      %v1894 = vpop.f32.mrb[0].mxu0
      %v1895 = vadd.f32 %v1851, %v1894
      %v1896 = vpop.f32.mrb[0].mxu0
      %v1897 = vpop.f32.mrb[0].mxu0
      %1898 = vdwg.mxu0
      %v1899 = vld [vmem:[%s5] sm:$0x1]
      %1900 = vrot.lane.b32.xlu0 %v1510, 94
      %v1901 = vpop.permute.xlu0 %1900
      %1902 = vrot.lane.b32.xlu0 %v1508, 94
      %v1903 = vpop.permute.xlu0 %1902
      %1904 = vrot.lane.b32.xlu0 %v1512, 94
      %v1905 = vpop.permute.xlu0 %1904
      %v1906 = vsel %vm819, %v1901, %v1903
      %v1907 = vsel %vm819, %v1903, %v1905
      %v1909 = vsel %vm955, %v1899, 0
      %v1912 = vsel %vm959, %v1906, 0
      %v1915 = vsel %vm959, %v1907, 0
      %1917 = vmatprep.subr.bf16.mxu0 %v1915
      %1918 = vmatpush1.bf16.msra.mxu0 %v1912
      %1919 = vmatprep.subr.bf16.mxu0 0
      %1920 = vmatpush1.bf16.msra.mxu0 0
      %1921 = vmatprep.subr.bf16.mxu0 0
      %1922 = vmatpush1.bf16.msra.mxu0 0
      %1923 = vmatprep.subr.bf16.mxu0 0
      %1924 = vmatpush1.bf16.msra.mxu0 0
      %1925 = vmatprep.subr.bf16.mxu0 0
      %1926 = vmatpush1.bf16.msra.mxu0 0
      %1927 = vmatprep.subr.bf16.mxu0 0
      %1928 = vmatpush1.bf16.msra.mxu0 0
      %1929 = vmatprep.subr.bf16.mxu0 0
      %1930 = vmatpush1.bf16.msra.mxu0 0
      %1931 = vmatprep.subr.bf16.mxu0 0
      %1932 = vmatpush1.bf16.msra.mxu0 0
      %1933 = vmatprep.subr.bf16.mxu0 0
      %1934 = vmatpush1.bf16.msra.mxu0 0
      %1935 = vmatprep.subr.bf16.mxu0 0
      %1936 = vmatpush1.bf16.msra.mxu0 0
      %1937 = vmatprep.subr.bf16.mxu0 0
      %1938 = vmatpush1.bf16.msra.mxu0 0
      %1939 = vmatprep.subr.bf16.mxu0 0
      %1940 = vmatpush1.bf16.msra.mxu0 0
      %1941 = vmatprep.subr.bf16.mxu0 0
      %1942 = vmatpush1.bf16.msra.mxu0 0
      %1943 = vmatprep.subr.bf16.mxu0 0
      %1944 = vmatpush1.bf16.msra.mxu0 0
      %1945 = vmatprep.subr.bf16.mxu0 0
      %1946 = vmatpush1.bf16.msra.mxu0 0
      %1947 = vmatprep.subr.bf16.mxu0 0
      %1948 = vmatpush1.bf16.msra.mxu0 0
      %1949 = vmatprep.mubr.bf16.mxu0 0
      %1950 = vmatmul.mubr.bf16.gmra.mrb[0].mxu0 %v1909
      %v1951 = vpop.f32.mrb[0].mxu0
      %v1952 = vadd.f32 0.0, %v1951
      %v1953 = vpop.f32.mrb[0].mxu0
      %v1954 = vadd.f32 0.0, %v1953
      %v1955 = vpop.f32.mrb[0].mxu0
      %v1956 = vpop.f32.mrb[0].mxu0
      %1957 = vdwg.mxu0
      %v1959 = vsel %vm955, %v1808, 0
      %1961 = vmatprep.subr.bf16.mxu0 %v1602
      %1962 = vmatpush1.bf16.msra.mxu0 %v1599
      %1963 = vmatprep.subr.bf16.mxu0 0
      %1964 = vmatpush1.bf16.msra.mxu0 0
      %1965 = vmatprep.subr.bf16.mxu0 0
      %1966 = vmatpush1.bf16.msra.mxu0 0
      %1967 = vmatprep.subr.bf16.mxu0 0
      %1968 = vmatpush1.bf16.msra.mxu0 0
      %1969 = vmatprep.subr.bf16.mxu0 0
      %1970 = vmatpush1.bf16.msra.mxu0 0
      %1971 = vmatprep.subr.bf16.mxu0 0
      %1972 = vmatpush1.bf16.msra.mxu0 0
      %1973 = vmatprep.subr.bf16.mxu0 0
      %1974 = vmatpush1.bf16.msra.mxu0 0
      %1975 = vmatprep.subr.bf16.mxu0 0
      %1976 = vmatpush1.bf16.msra.mxu0 0
      %1977 = vmatprep.subr.bf16.mxu0 0
      %1978 = vmatpush1.bf16.msra.mxu0 0
      %1979 = vmatprep.subr.bf16.mxu0 0
      %1980 = vmatpush1.bf16.msra.mxu0 0
      %1981 = vmatprep.subr.bf16.mxu0 0
      %1982 = vmatpush1.bf16.msra.mxu0 0
      %1983 = vmatprep.subr.bf16.mxu0 0
      %1984 = vmatpush1.bf16.msra.mxu0 0
      %1985 = vmatprep.subr.bf16.mxu0 0
      %1986 = vmatpush1.bf16.msra.mxu0 0
      %1987 = vmatprep.subr.bf16.mxu0 0
      %1988 = vmatpush1.bf16.msra.mxu0 0
      %1989 = vmatprep.subr.bf16.mxu0 0
      %1990 = vmatpush1.bf16.msra.mxu0 0
      %1991 = vmatprep.subr.bf16.mxu0 0
      %1992 = vmatpush1.bf16.msra.mxu0 0
      %1993 = vmatprep.mubr.bf16.mxu0 0
      %1994 = vmatmul.mubr.bf16.gmra.mrb[0].mxu0 %v1959
      %v1995 = vpop.f32.mrb[0].mxu0
      %v1996 = vadd.f32 %v1952, %v1995
      %v1997 = vpop.f32.mrb[0].mxu0
      %v1998 = vadd.f32 %v1954, %v1997
      %v1999 = vpop.f32.mrb[0].mxu0
      %v2000 = vpop.f32.mrb[0].mxu0
      %2001 = vdwg.mxu0
      %v2002 = vmul.f32 %v1996, %v910
      %v2003 = vmul.f32 %v1998, %v914
      %v2004 = vadd.f32 %v1893, %v2002
      %v2005 = vadd.f32 %v1895, %v2003
      %v2006 = vadd.f32 %v2004, %v1519
      %v2007 = vadd.f32 %v2005, %v1519
      %v2008 = vmax.f32 %v2006, 0.0
      %v2009 = vmax.f32 %v2007, 0.0
      %v2012 = vrot.slane %v1693, 6
      %v2013 = vrot.slane %v1694, 6
      %v2018 = vrot.slane %v1803, 4
      %v2019 = vrot.slane %v1804, 4
      %v2024 = vrot.slane %v2008, 2
      %v2025 = vrot.slane %v2009, 2
      %v2028 = vsel %vm959, %v1581, %v2012
      %v2029 = vsel %vm959, %v1582, %v2013
      %v2030 = vsel %vm344, %v2028, %v2018
      %v2031 = vsel %vm344, %v2029, %v2019
      %vm2032 = vcmask 1045504
      %v2033 = vsel %vm2032, %v2030, %v2024
      %v2034 = vsel %vm2032, %v2031, %v2025
      %2035 = vst [vmem:[%s305] sm:$0xff] %v2033
      %2036 = vst [vmem:[%s305 + $0x8] sm:$0xff] %v2034
      %p2037 = scmp.lt.s32.totalorder %s19, 1
      %s2038 = scalar_select %p2037, %s19, 1
      %s2039 = smul.addr %s2038, 2
      %s2040 = smul.addr %s2039, 8
      %s2041 = scalar_lea.vmem %s8, %s2040
      // Predicated region
      $region53: #{decoder_forward.1} parent=51 // pred_check
        %p2042 = pneg %p210
      $region54: #{decoder_forward.1} parent=51 // pred_check_branch
        %2044 = sbr.rel (%p2042) target = $region56
      $region55: #{decoder_forward.1} parent=51 // pred_region
        _
      $region56: #{decoder_forward.1} parent=51 // pred_fallthru
        _
    $region52: #{decoder_forward.1} parent=5 // pred_fallthru
      _
    %p2045 = scmp.le.s32.totalorder 2, %s14
    // Predicated region
    $region57: #{decoder_forward.1} parent=5 // pred_check
      %p2046 = pneg %p2045
    $region58: #{decoder_forward.1} parent=5 // pred_check_branch
      %2048 = sbr.rel (%p2046) target = $region60
    $region59: #{decoder_forward.1} parent=5 // pred_region
      %s2049 = ssub.s32 %s14, 2
      // Predicated region
      $region61: #{decoder_forward.1} parent=59 // pred_check
        %p2050 = pneg %p216
      $region62: #{decoder_forward.1} parent=59 // pred_check_branch
        %2052 = sbr.rel (%p2050) target = $region64
      $region63: #{decoder_forward.1} parent=59 // pred_region
        %p2053 = scmp.lt.s32.totalorder %s20, 1
        %s2054 = scalar_select %p2053, %s20, 1
        %s2055 = smul.addr %s2054, 2
        %s2056 = smul.addr %s2055, 8
        %s2057 = scalar_lea.vmem %s8, %s2056
      $region64: #{decoder_forward.1} parent=59 // pred_fallthru
        _
    $region60: #{decoder_forward.1} parent=5 // pred_fallthru
      _
  $region6: #{decoder_forward.1} parent=0 // loop_footer
    %s18 = sadd.s32 1, %s14
  $region7: #{decoder_forward.1} parent=0 // loop_footer_branch
    %13 = sbr.rel target = $region3
  $region8: #{decoder_forward.1} parent=0 // loop_exit
    _

</llo_original>
